<compile_context>
chip_gen: v5e
topology: v5e:2x2
jax: 0.10.0
libtpu: 0.0.40
codegen_flags: <defaults>
</compile_context>

<pallas_src>
import numpy as np
import jax
import jax.numpy as jnp
from jax import lax
from jax.experimental import pallas as pl
from jax.experimental.pallas import tpu as pltpu


def make_ns_kernel(n, steps):
    n2 = 2 * n

    def ns_kernel(vxy_ref, ca_ref, cb_ref, cg_ref, ck_ref, out_ref):
        # ---- packed constants (loaded once, loop-invariant) ----------------
        SC_F   = ca_ref[0:n2, :]                # (2n, n)  fwd row stage (velocity)
        SC_RHS = ca_ref[n2:2 * n2, :]           # (2n, n)  fwd row stage (rhs): -dt*dealias_x*F
        RC_F   = cb_ref[0:n2, :]                # (2n, 2n) fwd lane stage (velocity)
        RC_RHS = cb_ref[n2:2 * n2, :]           # (2n, 2n) fwd lane stage (rhs): F*dealias_y
        LC_DX  = cb_ref[2 * n2:2 * n2 + n, :]   # (n, 2n)  inv row stage, i*kx and 1/N^2 folded
        LC_0   = cb_ref[2 * n2 + n:3 * n2, :]   # (n, 2n)  inv row stage, 1/N^2 folded
        CGRAD  = cg_ref[...]                    # (2n, 4n) [RC(conjF) | RC(i*ky*conjF)]
        RC_CF  = CGRAD[:, 0:n2]                 # (2n, 2n) inv lane stage (plain conjF)
        KXY    = ck_ref[0:n2, :]                # (2n, 2n) f32 [kx ; ky], re/im-duplicated
        KXYKI  = ck_ref[n2:2 * n2, :]           # (2n, 2n) f32 KXY * kSq_inv
        DIFF   = ck_ref[2 * n2:3 * n2, :]       # (2n, 2n) f32 1/(1+dt*nu*kSq)

        # ---- in-kernel masks (no extra inputs) ------------------------------
        lane_s = lax.broadcasted_iota(jnp.int32, (n, n2), 1)
        left_mask = lane_s < n                                   # (n, 2n)
        lane_b = lax.broadcasted_iota(jnp.int32, (n2, n2), 1)
        row_b = lax.broadcasted_iota(jnp.int32, (n2, n2), 0)
        diag_quad = (lane_b < n) == (row_b < n)                  # (2n, 2n)

        def bf(x):
            return x.astype(jnp.bfloat16)

        def mm(a, b):
            # bf16 operands, f32 accumulation on the MXU.
            return jnp.dot(a, b, preferred_element_type=jnp.float32)

        def swap_rows(x):
            # swap top/bottom row halves; vreg-aligned slices + axis-0 concat.
            return jnp.concatenate([x[n:, :], x[:n, :]], axis=0)

        def quad_swap(x):
            # [[A,B],[C,D]] -> [[A,C],[B,D]]: moves re/im between rows<->lanes.
            # Full-vreg lane roll + row-half swap + select (no masked stores).
            r = swap_rows(pltpu.roll(x, n, axis=1))
            return jnp.where(diag_quad, x, r)

        def step(_, v):
            # v: (n, 2n) f32 = [vx | vy]
            vb = bf(v)

            # --- forward FFT of the velocity pair -> S-layout spectrum ------
            a = mm(SC_F, vb)                          # (2n,2n) re/im on rows
            hv = mm(bf(quad_swap(a)), RC_F)           # (2n,2n) [[vx_re,vx_im],[vy_re,vy_im]]

            # --- 4 velocity gradients: i*k folded into inverse constants ----
            p = mm(bf(hv), CGRAD)                     # (2n,4n) [d/dx lane stage | d/dy lane stage]
            ddx = mm(LC_DX, bf(quad_swap(p[:, 0:n2])))        # (n,2n) [dvx_x | dvy_x]
            ddy = mm(LC_0, bf(quad_swap(p[:, n2:2 * n2])))    # (n,2n) [dvx_y | dvy_y]

            # --- nonlinear advection term, lane-dense ------------------------
            vr = pltpu.roll(v, n, axis=1)             # [vy | vx]
            vxx = jnp.where(left_mask, v, vr)         # [vx | vx]
            vyy = jnp.where(left_mask, vr, v)         # [vy | vy]
            prod = vxx * ddx + vyy * ddy              # (n,2n) = [-rhs_x | -rhs_y]

            # --- forward FFT of rhs (sign, dt, 2/3-dealias folded) ------------
            ar = mm(SC_RHS, bf(prod))
            rh = mm(bf(quad_swap(ar)), RC_RHS)        # (2n,2n) = dt * dealias * fft2(rhs)

            # --- k-space update: Euler + pressure projection + diffusion -----
            # (i*kx)*(i*ky) factors of the projection cancel -> real multipliers.
            t = KXY * rh
            div = t + swap_rows(t)                    # both row halves = dt*(kx*Rx + ky*Ry)
            hn = DIFF * (hv + rh - KXYKI * div)

            # --- inverse FFT back to the real velocity slab -------------------
            pn = mm(bf(hn), RC_CF)
            return mm(LC_0, bf(quad_swap(pn)))        # (n,2n) = [vx_new | vy_new]

        out_ref[...] = lax.fori_loop(0, steps, step, vxy_ref[...])

    return ns_kernel


class NavierStokesSimulatorPallas:
    def __init__(self, N, L, dt, nu, forcing_func=None):
        # TODO(synk): forcing_func is None in this configuration; external
        # forcing is not implemented.
        assert forcing_func is None
        self.N = int(N)
        self.L = float(L)
        self.dt = float(dt)
        self.nu = float(nu)
        n = self.N

        # ---- Fourier-space setup (float64, mirrors setup_fourier_space) ----
        klin = 2.0 * np.pi / self.L * np.arange(-n // 2, n // 2, dtype=np.float64)
        kvec = np.fft.ifftshift(klin)
        kmax = np.max(klin)
        dmask = (np.abs(kvec) < (2.0 / 3.0) * kmax).astype(np.float64)
        kx2 = np.broadcast_to(kvec[:, None], (n, n))
        ky2 = np.broadcast_to(kvec[None, :], (n, n))
        kSq = kx2 ** 2 + ky2 ** 2
        kSq_inv = 1.0 / np.where(kSq == 0.0, 1.0, kSq)
        kSq_inv = np.where(kSq == 0.0, 1.0, kSq_inv)
        diff2 = 1.0 / (1.0 + self.dt * self.nu * kSq)

        # kept (f32) for the pure-JAX reference / inspection
        self.kx = jnp.asarray(kx2, jnp.float32)
        self.ky = jnp.asarray(ky2, jnp.float32)
        self.kSq_inv = jnp.asarray(kSq_inv, jnp.float32)
        self.dealias = jnp.asarray(dmask[:, None] * dmask[None, :], jnp.float32)
        self.diff = jnp.asarray(diff2, jnp.float32)

        # ---- split-complex DFT constants with everything folded in ----------
        idx = np.arange(n, dtype=np.float64)
        F = np.exp(-2j * np.pi * np.outer(idx, idx) / n)        # (n, n) complex
        cF = np.conj(F)

        def SC(M):   # real-input row (left) transform -> [re ; im] rows
            return np.concatenate([M.real, M.imag], axis=0)

        def RC(M):   # complex lane (right) transform on [re | im] slabs
            return np.block([[M.real, M.imag], [-M.imag, M.real]])

        def LC(M):   # real-output row (left) transform on [re ; im] operands
            return np.concatenate([M.real, -M.imag], axis=1)

        inv_n2 = 1.0 / float(n * n)
        SC_F = SC(F)
        SC_RHS = SC(-self.dt * (dmask[:, None] * F))            # -1, dt, dealias_x folded
        RC_F = RC(F)
        RC_RHS = RC(F * dmask[None, :])                         # dealias_y folded
        RC_CF = RC(cF)
        RC_CF_DY = RC((1j * kvec)[:, None] * cF)                # i*ky folded
        LC_DX = LC((cF * (1j * kvec)[None, :]) * inv_n2)        # i*kx, 1/N^2 folded
        LC_0 = LC(cF * inv_n2)                                  # 1/N^2 folded

        bf16 = lambda a: jnp.asarray(a, jnp.bfloat16)
        f32 = lambda a: jnp.asarray(a, jnp.float32)
        self.const_a = bf16(np.concatenate([SC_F, SC_RHS], axis=0))                 # (4n, n)
        self.const_b = bf16(np.concatenate([RC_F, RC_RHS, LC_DX, LC_0], axis=0))    # (6n, 2n)
        self.const_g = bf16(np.concatenate([RC_CF, RC_CF_DY], axis=1))              # (2n, 4n)
        kxy = np.concatenate([np.tile(kx2, (1, 2)), np.tile(ky2, (1, 2))], axis=0)  # (2n, 2n)
        kxyki = kxy * np.tile(kSq_inv, (2, 2))
        diffc = np.tile(diff2, (2, 2))
        self.const_k = f32(np.concatenate([kxy, kxyki, diffc], axis=0))              # (6n, 2n)

        self._calls = {}
        self._get_call(1)

    def _get_call(self, steps):
        if steps not in self._calls:
            n = self.N
            vmem = pl.BlockSpec(memory_space=pltpu.MemorySpace.VMEM)
            self._calls[steps] = pl.pallas_call(
                make_ns_kernel(n, steps),
                out_shape=jax.ShapeDtypeStruct((n, 2 * n), jnp.float32),
                in_specs=[vmem] * 5,
                out_specs=vmem,
            )
        return self._calls[steps]

    def step_many(self, vx, vy, steps):
        """Run `steps` time steps inside one pallas_call (state stays in VMEM)."""
        n = self.N
        vxy = jnp.concatenate([vx.astype(jnp.float32), vy.astype(jnp.float32)], axis=1)
        out = self._get_call(int(steps))(vxy, self.const_a, self.const_b,
                                         self.const_g, self.const_k)
        return out[:, :n], out[:, n:]

    def __call__(self, vx, vy):
        # Matches NavierStokesSimulator.forward (one time step).
        return self.step_many(vx, vy, 1)


# ------------------- pure-JAX reference (for sanity check) -------------------
def reference_forward(sim, vx, vy):
    kx, ky = sim.kx, sim.ky
    kinv, dealias, diff, dt = sim.kSq_inv, sim.dealias, sim.diff, sim.dt

    def grad(v):
        vh = jnp.fft.fftn(v)
        return (jnp.real(jnp.fft.ifftn(1j * kx * vh)),
                jnp.real(jnp.fft.ifftn(1j * ky * vh)))

    def div(ax, ay):
        return (jnp.real(jnp.fft.ifftn(1j * kx * jnp.fft.fftn(ax)))
                + jnp.real(jnp.fft.ifftn(1j * ky * jnp.fft.fftn(ay))))

    def dealias_f(f):
        return jnp.real(jnp.fft.ifftn(dealias * jnp.fft.fftn(f)))

    dvx_x, dvx_y = grad(vx)
    dvy_x, dvy_y = grad(vy)
    rhs_x = -(vx * dvx_x + vy * dvx_y)
    rhs_y = -(vx * dvy_x + vy * dvy_y)
    rhs_x = dealias_f(rhs_x)
    rhs_y = dealias_f(rhs_y)
    vx = vx + dt * rhs_x
    vy = vy + dt * rhs_y
    div_rhs = div(rhs_x, rhs_y)
    P = jnp.real(jnp.fft.ifftn(-jnp.fft.fftn(div_rhs) * kinv))
    dPx, dPy = grad(P)
    vx = vx - dt * dPx
    vy = vy - dt * dPy
    vx = jnp.real(jnp.fft.ifftn(jnp.fft.fftn(vx) * diff))
    vy = jnp.real(jnp.fft.ifftn(jnp.fft.fftn(vy) * diff))
    return vx, vy


if __name__ == "__main__":
    N = 64
    L = 2.0 * np.pi
    dt = 0.01
    nu = 1e-3

    sim = NavierStokesSimulatorPallas(N, L, dt, nu)

    key = jax.random.PRNGKey(0)
    kvx, kvy = jax.random.split(key)
    vx = jax.random.normal(kvx, (N, N), dtype=jnp.float32)
    vy = jax.random.normal(kvy, (N, N), dtype=jnp.float32)

    # single step vs. the f32 FFT reference
    vx1, vy1 = sim(vx, vy)
    jax.block_until_ready((vx1, vy1))
    vx_ref, vy_ref = reference_forward(sim, vx, vy)
    err = np.concatenate([np.asarray(vx1 - vx_ref).ravel(),
                          np.asarray(vy1 - vy_ref).ravel()])
    rms = float(np.sqrt(np.mean(err ** 2)))
    # bf16 MXU operands vs. f32 FFTs: chained-DFT rounding is a few e-3 RMS.
    # Any real structural bug (sign / layout / constant mix-up) gives O(0.1-10)
    # errors, so these bounds still have a large detection margin.
    assert rms < 1e-2, f"single-step RMS error too large: {rms}"
    np.testing.assert_allclose(np.asarray(vx1), np.asarray(vx_ref), rtol=5e-2, atol=5e-2)
    np.testing.assert_allclose(np.asarray(vy1), np.asarray(vy_ref), rtol=5e-2, atol=5e-2)

    # multi-step rollout path (amortises launch + constant DMA): smoke test
    vx4, vy4 = sim.step_many(vx, vy, steps=4)
    jax.block_until_ready((vx4, vy4))
    assert np.all(np.isfinite(np.asarray(vx4)))
    assert np.all(np.isfinite(np.asarray(vy4)))

    print("KERNEL_OK")
</pallas_src>

<mosaic_0001>
module attributes {stable_mosaic.version = 11 : i64} {
  func.func @ns_kernel(%arg0: memref<64x128xf32, #tpu.memory_space<vmem>>, %arg1: memref<256x64xbf16, #tpu.memory_space<vmem>>, %arg2: memref<384x128xbf16, #tpu.memory_space<vmem>>, %arg3: memref<128x256xbf16, #tpu.memory_space<vmem>>, %arg4: memref<384x128xf32, #tpu.memory_space<vmem>>, %arg5: memref<64x128xf32, #tpu.memory_space<vmem>>) attributes {dimension_semantics = [], scalar_prefetch = 0 : i64, scratch_operands = 0 : i64, tpu.core_type = #tpu.core_type<tc>} {
    %c0 = arith.constant 0 : index
    %c0_0 = arith.constant 0 : index
    %0 = vector.load %arg1[%c0, %c0_0] : memref<256x64xbf16, #tpu.memory_space<vmem>>, vector<128x64xbf16>
    %c128 = arith.constant 128 : index
    %c0_1 = arith.constant 0 : index
    %1 = vector.load %arg1[%c128, %c0_1] : memref<256x64xbf16, #tpu.memory_space<vmem>>, vector<128x64xbf16>
    %c0_2 = arith.constant 0 : index
    %c0_3 = arith.constant 0 : index
    %2 = vector.load %arg2[%c0_2, %c0_3] : memref<384x128xbf16, #tpu.memory_space<vmem>>, vector<128x128xbf16>
    %c128_4 = arith.constant 128 : index
    %c0_5 = arith.constant 0 : index
    %3 = vector.load %arg2[%c128_4, %c0_5] : memref<384x128xbf16, #tpu.memory_space<vmem>>, vector<128x128xbf16>
    %c256 = arith.constant 256 : index
    %c0_6 = arith.constant 0 : index
    %4 = vector.load %arg2[%c256, %c0_6] : memref<384x128xbf16, #tpu.memory_space<vmem>>, vector<64x128xbf16>
    %c320 = arith.constant 320 : index
    %c0_7 = arith.constant 0 : index
    %5 = vector.load %arg2[%c320, %c0_7] : memref<384x128xbf16, #tpu.memory_space<vmem>>, vector<64x128xbf16>
    %c0_8 = arith.constant 0 : index
    %c0_9 = arith.constant 0 : index
    %6 = vector.load %arg3[%c0_8, %c0_9] : memref<128x256xbf16, #tpu.memory_space<vmem>>, vector<128x256xbf16>
    %7 = vector.extract_strided_slice %6 {offsets = [0, 0], sizes = [128, 128], strides = [1, 1]} : vector<128x256xbf16> to vector<128x128xbf16>
    %c0_10 = arith.constant 0 : index
    %c0_11 = arith.constant 0 : index
    %8 = vector.load %arg4[%c0_10, %c0_11] : memref<384x128xf32, #tpu.memory_space<vmem>>, vector<128x128xf32>
    %c128_12 = arith.constant 128 : index
    %c0_13 = arith.constant 0 : index
    %9 = vector.load %arg4[%c128_12, %c0_13] : memref<384x128xf32, #tpu.memory_space<vmem>>, vector<128x128xf32>
    %c256_14 = arith.constant 256 : index
    %c0_15 = arith.constant 0 : index
    %10 = vector.load %arg4[%c256_14, %c0_15] : memref<384x128xf32, #tpu.memory_space<vmem>>, vector<128x128xf32>
    %11 = tpu.iota {dimensions = array<i32: 1>} : vector<64x128xi32>
    %c64_i32 = arith.constant 64 : i32
    %12 = vector.broadcast %c64_i32 : i32 to vector<64x128xi32>
    %13 = arith.cmpi slt, %11, %12 : vector<64x128xi32>
    %14 = tpu.iota {dimensions = array<i32: 1>} : vector<128x128xi32>
    %15 = tpu.iota {dimensions = array<i32: 0>} : vector<128x128xi32>
    %c64_i32_16 = arith.constant 64 : i32
    %16 = vector.broadcast %c64_i32_16 : i32 to vector<128x128xi32>
    %17 = arith.cmpi slt, %14, %16 : vector<128x128xi32>
    %c64_i32_17 = arith.constant 64 : i32
    %18 = vector.broadcast %c64_i32_17 : i32 to vector<128x128xi32>
    %19 = arith.cmpi slt, %15, %18 : vector<128x128xi32>
    %20 = arith.xori %17, %19 : vector<128x128xi1>
    %cst = arith.constant dense<true> : vector<128x128xi1>
    %21 = arith.xori %20, %cst : vector<128x128xi1>
    %c0_18 = arith.constant 0 : index
    %c0_19 = arith.constant 0 : index
    %22 = vector.load %arg0[%c0_18, %c0_19] : memref<64x128xf32, #tpu.memory_space<vmem>>, vector<64x128xf32>
    %c0_i32 = arith.constant 0 : i32
    %23 = arith.truncf %22 : vector<64x128xf32> to vector<64x128xbf16>
    %cst_20 = arith.constant dense<0.000000e+00> : vector<128x128xf32>
    %24 = tpu.matmul %0, %23, %cst_20 {dimension_numbers = #tpu.dot_dimension_numbers<[1], [0], [0], [1], [0, 0, 1, 1], [], []>} : vector<128x64xbf16>, vector<64x128xbf16>, vector<128x128xf32> -> vector<128x128xf32>
    %c64_i32_21 = arith.constant 64 : i32
    %25 = tpu.dynamic_rotate %24 by %c64_i32_21 dim 1 : vector<128x128xf32>, i32 -> vector<128x128xf32>
    %26 = vector.extract_strided_slice %25 {offsets = [64, 0], sizes = [64, 128], strides = [1, 1]} : vector<128x128xf32> to vector<64x128xf32>
    %27 = vector.extract_strided_slice %25 {offsets = [0, 0], sizes = [64, 128], strides = [1, 1]} : vector<128x128xf32> to vector<64x128xf32>
    %28 = tpu.concatenate %26, %27 in 0 : vector<64x128xf32>, vector<64x128xf32> -> vector<128x128xf32>
    %29 = arith.select %21, %24, %28 : vector<128x128xi1>, vector<128x128xf32>
    %30 = arith.truncf %29 : vector<128x128xf32> to vector<128x128xbf16>
    %cst_22 = arith.constant dense<0.000000e+00> : vector<128x128xf32>
    %31 = tpu.matmul %30, %2, %cst_22 {dimension_numbers = #tpu.dot_dimension_numbers<[1], [0], [0], [1], [0, 0, 1, 1], [], []>} : vector<128x128xbf16>, vector<128x128xbf16>, vector<128x128xf32> -> vector<128x128xf32>
    %32 = arith.truncf %31 : vector<128x128xf32> to vector<128x128xbf16>
    %cst_23 = arith.constant dense<0.000000e+00> : vector<128x256xf32>
    %33 = tpu.matmul %32, %6, %cst_23 {dimension_numbers = #tpu.dot_dimension_numbers<[1], [0], [0], [1], [0, 0, 1, 1], [], []>} : vector<128x128xbf16>, vector<128x256xbf16>, vector<128x256xf32> -> vector<128x256xf32>
    %34 = vector.extract_strided_slice %33 {offsets = [0, 0], sizes = [128, 128], strides = [1, 1]} : vector<128x256xf32> to vector<128x128xf32>
    %c64_i32_24 = arith.constant 64 : i32
    %35 = tpu.dynamic_rotate %34 by %c64_i32_24 dim 1 : vector<128x128xf32>, i32 -> vector<128x128xf32>
    %36 = vector.extract_strided_slice %35 {offsets = [64, 0], sizes = [64, 128], strides = [1, 1]} : vector<128x128xf32> to vector<64x128xf32>
    %37 = vector.extract_strided_slice %35 {offsets = [0, 0], sizes = [64, 128], strides = [1, 1]} : vector<128x128xf32> to vector<64x128xf32>
    %38 = tpu.concatenate %36, %37 in 0 : vector<64x128xf32>, vector<64x128xf32> -> vector<128x128xf32>
    %39 = arith.select %21, %34, %38 : vector<128x128xi1>, vector<128x128xf32>
    %40 = arith.truncf %39 : vector<128x128xf32> to vector<128x128xbf16>
    %cst_25 = arith.constant dense<0.000000e+00> : vector<64x128xf32>
    %41 = tpu.matmul %4, %40, %cst_25 {dimension_numbers = #tpu.dot_dimension_numbers<[1], [0], [0], [1], [0, 0, 1, 1], [], []>} : vector<64x128xbf16>, vector<128x128xbf16>, vector<64x128xf32> -> vector<64x128xf32>
    %42 = vector.extract_strided_slice %33 {offsets = [0, 128], sizes = [128, 128], strides = [1, 1]} : vector<128x256xf32> to vector<128x128xf32>
    %c64_i32_26 = arith.constant 64 : i32
    %43 = tpu.dynamic_rotate %42 by %c64_i32_26 dim 1 : vector<128x128xf32>, i32 -> vector<128x128xf32>
    %44 = vector.extract_strided_slice %43 {offsets = [64, 0], sizes = [64, 128], strides = [1, 1]} : vector<128x128xf32> to vector<64x128xf32>
    %45 = vector.extract_strided_slice %43 {offsets = [0, 0], sizes = [64, 128], strides = [1, 1]} : vector<128x128xf32> to vector<64x128xf32>
    %46 = tpu.concatenate %44, %45 in 0 : vector<64x128xf32>, vector<64x128xf32> -> vector<128x128xf32>
    %47 = arith.select %21, %42, %46 : vector<128x128xi1>, vector<128x128xf32>
    %48 = arith.truncf %47 : vector<128x128xf32> to vector<128x128xbf16>
    %cst_27 = arith.constant dense<0.000000e+00> : vector<64x128xf32>
    %49 = tpu.matmul %5, %48, %cst_27 {dimension_numbers = #tpu.dot_dimension_numbers<[1], [0], [0], [1], [0, 0, 1, 1], [], []>} : vector<64x128xbf16>, vector<128x128xbf16>, vector<64x128xf32> -> vector<64x128xf32>
    %c64_i32_28 = arith.constant 64 : i32
    %50 = tpu.dynamic_rotate %22 by %c64_i32_28 dim 1 : vector<64x128xf32>, i32 -> vector<64x128xf32>
    %51 = arith.select %13, %22, %50 : vector<64x128xi1>, vector<64x128xf32>
    %52 = arith.select %13, %50, %22 : vector<64x128xi1>, vector<64x128xf32>
    %53 = arith.mulf %51, %41 : vector<64x128xf32>
    %54 = arith.mulf %52, %49 : vector<64x128xf32>
    %55 = arith.addf %53, %54 : vector<64x128xf32>
    %56 = arith.truncf %55 : vector<64x128xf32> to vector<64x128xbf16>
    %cst_29 = arith.constant dense<0.000000e+00> : vector<128x128xf32>
    %57 = tpu.matmul %1, %56, %cst_29 {dimension_numbers = #tpu.dot_dimension_numbers<[1], [0], [0], [1], [0, 0, 1, 1], [], []>} : vector<128x64xbf16>, vector<64x128xbf16>, vector<128x128xf32> -> vector<128x128xf32>
    %c64_i32_30 = arith.constant 64 : i32
    %58 = tpu.dynamic_rotate %57 by %c64_i32_30 dim 1 : vector<128x128xf32>, i32 -> vector<128x128xf32>
    %59 = vector.extract_strided_slice %58 {offsets = [64, 0], sizes = [64, 128], strides = [1, 1]} : vector<128x128xf32> to vector<64x128xf32>
    %60 = vector.extract_strided_slice %58 {offsets = [0, 0], sizes = [64, 128], strides = [1, 1]} : vector<128x128xf32> to vector<64x128xf32>
    %61 = tpu.concatenate %59, %60 in 0 : vector<64x128xf32>, vector<64x128xf32> -> vector<128x128xf32>
    %62 = arith.select %21, %57, %61 : vector<128x128xi1>, vector<128x128xf32>
    %63 = arith.truncf %62 : vector<128x128xf32> to vector<128x128xbf16>
    %cst_31 = arith.constant dense<0.000000e+00> : vector<128x128xf32>
    %64 = tpu.matmul %63, %3, %cst_31 {dimension_numbers = #tpu.dot_dimension_numbers<[1], [0], [0], [1], [0, 0, 1, 1], [], []>} : vector<128x128xbf16>, vector<128x128xbf16>, vector<128x128xf32> -> vector<128x128xf32>
    %65 = arith.mulf %8, %64 : vector<128x128xf32>
    %66 = vector.extract_strided_slice %65 {offsets = [64, 0], sizes = [64, 128], strides = [1, 1]} : vector<128x128xf32> to vector<64x128xf32>
    %67 = vector.extract_strided_slice %65 {offsets = [0, 0], sizes = [64, 128], strides = [1, 1]} : vector<128x128xf32> to vector<64x128xf32>
    %68 = tpu.concatenate %66, %67 in 0 : vector<64x128xf32>, vector<64x128xf32> -> vector<128x128xf32>
    %69 = arith.addf %65, %68 : vector<128x128xf32>
    %70 = arith.addf %31, %64 : vector<128x128xf32>
    %71 = arith.mulf %9, %69 : vector<128x128xf32>
    %72 = arith.subf %70, %71 : vector<128x128xf32>
    %73 = arith.mulf %10, %72 : vector<128x128xf32>
    %74 = arith.truncf %73 : vector<128x128xf32> to vector<128x128xbf16>
    %cst_32 = arith.constant dense<0.000000e+00> : vector<128x128xf32>
    %75 = tpu.matmul %74, %7, %cst_32 {dimension_numbers = #tpu.dot_dimension_numbers<[1], [0], [0], [1], [0, 0, 1, 1], [], []>} : vector<128x128xbf16>, vector<128x128xbf16>, vector<128x128xf32> -> vector<128x128xf32>
    %c64_i32_33 = arith.constant 64 : i32
    %76 = tpu.dynamic_rotate %75 by %c64_i32_33 dim 1 : vector<128x128xf32>, i32 -> vector<128x128xf32>
    %77 = vector.extract_strided_slice %76 {offsets = [64, 0], sizes = [64, 128], strides = [1, 1]} : vector<128x128xf32> to vector<64x128xf32>
    %78 = vector.extract_strided_slice %76 {offsets = [0, 0], sizes = [64, 128], strides = [1, 1]} : vector<128x128xf32> to vector<64x128xf32>
    %79 = tpu.concatenate %77, %78 in 0 : vector<64x128xf32>, vector<64x128xf32> -> vector<128x128xf32>
    %80 = arith.select %21, %75, %79 : vector<128x128xi1>, vector<128x128xf32>
    %81 = arith.truncf %80 : vector<128x128xf32> to vector<128x128xbf16>
    %cst_34 = arith.constant dense<0.000000e+00> : vector<64x128xf32>
    %82 = tpu.matmul %5, %81, %cst_34 {dimension_numbers = #tpu.dot_dimension_numbers<[1], [0], [0], [1], [0, 0, 1, 1], [], []>} : vector<64x128xbf16>, vector<128x128xbf16>, vector<64x128xf32> -> vector<64x128xf32>
    %c0_35 = arith.constant 0 : index
    %c0_36 = arith.constant 0 : index
    %83 = vector.load %arg5[%c0_35, %c0_36] : memref<64x128xf32, #tpu.memory_space<vmem>>, vector<64x128xf32>
    tpu.vector_store %arg5[%c0_35, %c0_36], %82 {strides = array<i32>} : memref<64x128xf32, #tpu.memory_space<vmem>>, vector<64x128xf32>,
    return
  }
}

</mosaic_0001>

<llo_original>
// kernel: tpu_custom_call.1
$region0: #{tpu_custom_call.1}
  #allocation0 [shape = 'u32[]', space=smem, size = 0x4, offset = 0x4, fixed_abs, tag = 'smem constant byte address 0x4 - core index']
  #allocation1 [shape = 'u32[72,128]{1,0:T(1,128)}', space=vmem, size = 0x9000, scoped, tag = 'internal scratch']
  %s0 = inlined_call_operand.hbm [shape: f32[64,128], index: 0, kind: input, shape index: {}]
  %s1 = inlined_call_operand.vmem [shape: bf16[256,64], index: 1, kind: input, shape index: {}]
  %s2 = inlined_call_operand.vmem [shape: bf16[384,128], index: 2, kind: input, shape index: {}]
  %s3 = inlined_call_operand.hbm [shape: bf16[128,256], index: 3, kind: input, shape index: {}]
  %s4 = inlined_call_operand.hbm [shape: f32[384,128], index: 4, kind: input, shape index: {}]
  %s5 = inlined_call_operand.hbm [shape: f32[64,128], index: 5, kind: output, shape index: {}]
  %s6 = sld [smem:[#allocation0]]
  $region42: #{tpu_custom_call.1} parent=0
    _
  %s8 = ssub.s32 1, %s6
  %s9 = scalar_select 0, %s8, %s6
  $region1: #{tpu_custom_call.1} parent=0
    #allocation2 [shape = 'u8[32768]{0}', space=vmem, size = 0x8000, scoped, tag = 'input window, operand 0, single buffered']
    #allocation3 [shape = 's32[1]{0}', space=sflag, size = 0x4, scoped, tag = 'scoped memory for tpu_custom_call.1']
    #allocation4 [shape = 's32[1]{0}', space=sflag, size = 0x4, scoped, tag = 'scoped memory for tpu_custom_call.1']
    #allocation5 [shape = 'u8[65536]{0}', space=vmem, size = 0x10000, scoped, tag = 'input window, operand 3, single buffered']
    #allocation6 [shape = 's32[1]{0}', space=sflag, size = 0x4, scoped, tag = 'scoped memory for tpu_custom_call.1']
    #allocation7 [shape = 'u8[196608]{0}', space=vmem, size = 0x30000, scoped, tag = 'input window, operand 4, single buffered']
    #allocation8 [shape = 'u8[32768]{0}', space=vmem, size = 0x8000, scoped, tag = 'output window, operand 0, single buffered']
    %10 = vsyncpa [#allocation3], 0
    %11 = vsyncpa [#allocation6], 0
    %12 = vsyncpa [#allocation4], 0
    // Predicated region
    $region2: #{tpu_custom_call.1} parent=1 // pred_check
      _
    $region3: #{tpu_custom_call.1} parent=1 // pred_check_branch
      %14 = sbr.rel (0) target = $region5
    $region4: #{tpu_custom_call.1} parent=1 // pred_region
      %16 = vsyncadd [#allocation3], 0
      %s17 = sshll.u32 %s0, 4
      %s18 = int_to_ptr.hbm [resolvable:$true] %s17
      %s19 = sshll.u32 [#allocation2], 4
      %s20 = int_to_ptr.vmem [resolvable:$true] %s19
      %25 = dma.hbm_to_vmem [thread:$0]  %s18, 1024, %s20, [#allocation3], 128, 128, 8
    $region5: #{tpu_custom_call.1} parent=1 // pred_fallthru
      _
    // Predicated region
    $region6: #{tpu_custom_call.1} parent=1 // pred_check
      _
    $region7: #{tpu_custom_call.1} parent=1 // pred_check_branch
      %27 = sbr.rel (0) target = $region9
    $region8: #{tpu_custom_call.1} parent=1 // pred_region
      _
    $region9: #{tpu_custom_call.1} parent=1 // pred_fallthru
      _
    // Predicated region
    $region10: #{tpu_custom_call.1} parent=1 // pred_check
      _
    $region11: #{tpu_custom_call.1} parent=1 // pred_check_branch
      %29 = sbr.rel (0) target = $region13
    $region12: #{tpu_custom_call.1} parent=1 // pred_region
      _
    $region13: #{tpu_custom_call.1} parent=1 // pred_fallthru
      _
    // Predicated region
    $region14: #{tpu_custom_call.1} parent=1 // pred_check
      _
    $region15: #{tpu_custom_call.1} parent=1 // pred_check_branch
      %31 = sbr.rel (0) target = $region17
    $region16: #{tpu_custom_call.1} parent=1 // pred_region
      %33 = vsyncadd [#allocation6], 0
      %s34 = sshll.u32 %s3, 4
      %s35 = int_to_ptr.hbm [resolvable:$true] %s34
      %s36 = sshll.u32 [#allocation5], 4
      %s37 = int_to_ptr.vmem [resolvable:$true] %s36
      %42 = dma.hbm_to_vmem [thread:$0]  %s35, 2048, %s37, [#allocation6], 128, 128, 8
    $region17: #{tpu_custom_call.1} parent=1 // pred_fallthru
      _
    // Predicated region
    $region18: #{tpu_custom_call.1} parent=1 // pred_check
      _
    $region19: #{tpu_custom_call.1} parent=1 // pred_check_branch
      %44 = sbr.rel (0) target = $region21
    $region20: #{tpu_custom_call.1} parent=1 // pred_region
      %46 = vsyncadd [#allocation6], 0
      %s47 = sshll.u32 %s4, 4
      %s48 = int_to_ptr.hbm [resolvable:$true] %s47
      %s49 = sshll.u32 [#allocation7], 4
      %s50 = int_to_ptr.vmem [resolvable:$true] %s49
      %55 = dma.hbm_to_vmem [thread:$0]  %s48, 6144, %s50, [#allocation6], 128, 128, 8
    $region21: #{tpu_custom_call.1} parent=1 // pred_fallthru
      _
    // Predicated region
    $region22: #{tpu_custom_call.1} parent=1 // pred_check
      _
    $region23: #{tpu_custom_call.1} parent=1 // pred_check_branch
      %57 = sbr.rel (0) target = $region25
    $region24: #{tpu_custom_call.1} parent=1 // pred_region
      %59 = dma.done [#allocation3], 1024
    $region25: #{tpu_custom_call.1} parent=1 // pred_fallthru
      _
    // Predicated region
    $region26: #{tpu_custom_call.1} parent=1 // pred_check
      _
    $region27: #{tpu_custom_call.1} parent=1 // pred_check_branch
      %61 = sbr.rel (0) target = $region29
    $region28: #{tpu_custom_call.1} parent=1 // pred_region
      %63 = dma.done [#allocation6], 2048
    $region29: #{tpu_custom_call.1} parent=1 // pred_fallthru
      _
    // Predicated region
    $region30: #{tpu_custom_call.1} parent=1 // pred_check
      _
    $region31: #{tpu_custom_call.1} parent=1 // pred_check_branch
      %65 = sbr.rel (0) target = $region33
    $region32: #{tpu_custom_call.1} parent=1 // pred_region
      %67 = dma.done [#allocation6], 6144
    $region33: #{tpu_custom_call.1} parent=1 // pred_fallthru
      _
    %v69 = vld [vmem:[%s1] sm:$0xf]
    %v70 = vld [vmem:[%s1 + $0x4] sm:$0xf]
    %v71 = vld [vmem:[%s1 + $0x8] sm:$0xf]
    %v72 = vld [vmem:[%s1 + $0xc] sm:$0xf]
    %v73 = vld [vmem:[%s1 + $0x10] sm:$0xf]
    %v74 = vld [vmem:[%s1 + $0x14] sm:$0xf]
    %v75 = vld [vmem:[%s1 + $0x18] sm:$0xf]
    %v76 = vld [vmem:[%s1 + $0x1c] sm:$0xf]
    %v77 = vld [vmem:[%s1 + $0x20] sm:$0xf]
    %v78 = vld [vmem:[%s1 + $0x24] sm:$0xf]
    %v79 = vld [vmem:[%s1 + $0x28] sm:$0xf]
    %v80 = vld [vmem:[%s1 + $0x2c] sm:$0xf]
    %v81 = vld [vmem:[%s1 + $0x30] sm:$0xf]
    %v82 = vld [vmem:[%s1 + $0x34] sm:$0xf]
    %v83 = vld [vmem:[%s1 + $0x38] sm:$0xf]
    %v84 = vld [vmem:[%s1 + $0x3c] sm:$0xf]
    %v85 = vld [vmem:[%s1 + $0x40] sm:$0xf]
    %v86 = vld [vmem:[%s1 + $0x44] sm:$0xf]
    %v87 = vld [vmem:[%s1 + $0x48] sm:$0xf]
    %v88 = vld [vmem:[%s1 + $0x4c] sm:$0xf]
    %v89 = vld [vmem:[%s1 + $0x50] sm:$0xf]
    %v90 = vld [vmem:[%s1 + $0x54] sm:$0xf]
    %v91 = vld [vmem:[%s1 + $0x58] sm:$0xf]
    %v92 = vld [vmem:[%s1 + $0x5c] sm:$0xf]
    %v93 = vld [vmem:[%s1 + $0x60] sm:$0xf]
    %v94 = vld [vmem:[%s1 + $0x64] sm:$0xf]
    %v95 = vld [vmem:[%s1 + $0x68] sm:$0xf]
    %v96 = vld [vmem:[%s1 + $0x6c] sm:$0xf]
    %v97 = vld [vmem:[%s1 + $0x70] sm:$0xf]
    %v98 = vld [vmem:[%s1 + $0x74] sm:$0xf]
    %v99 = vld [vmem:[%s1 + $0x78] sm:$0xf]
    %v100 = vld [vmem:[%s1 + $0x7c] sm:$0xf]
    %v101 = vld [vmem:[%s2] sm:$0xf]
    %v102 = vld [vmem:[%s2 + $0x4] sm:$0xf]
    %v103 = vld [vmem:[%s2 + $0x8] sm:$0xf]
    %v104 = vld [vmem:[%s2 + $0xc] sm:$0xf]
    %v105 = vld [vmem:[%s2 + $0x10] sm:$0xf]
    %v106 = vld [vmem:[%s2 + $0x14] sm:$0xf]
    %v107 = vld [vmem:[%s2 + $0x18] sm:$0xf]
    %v108 = vld [vmem:[%s2 + $0x1c] sm:$0xf]
    %v109 = vld [vmem:[%s2 + $0x20] sm:$0xf]
    %v110 = vld [vmem:[%s2 + $0x24] sm:$0xf]
    %v111 = vld [vmem:[%s2 + $0x28] sm:$0xf]
    %v112 = vld [vmem:[%s2 + $0x2c] sm:$0xf]
    %v113 = vld [vmem:[%s2 + $0x30] sm:$0xf]
    %v114 = vld [vmem:[%s2 + $0x34] sm:$0xf]
    %v115 = vld [vmem:[%s2 + $0x38] sm:$0xf]
    %v116 = vld [vmem:[%s2 + $0x3c] sm:$0xf]
    %v117 = vld [vmem:[%s2 + $0x40] sm:$0xf]
    %v118 = vld [vmem:[%s2 + $0x44] sm:$0xf]
    %v119 = vld [vmem:[%s2 + $0x48] sm:$0xf]
    %v120 = vld [vmem:[%s2 + $0x4c] sm:$0xf]
    %v121 = vld [vmem:[%s2 + $0x50] sm:$0xf]
    %v122 = vld [vmem:[%s2 + $0x54] sm:$0xf]
    %v123 = vld [vmem:[%s2 + $0x58] sm:$0xf]
    %v124 = vld [vmem:[%s2 + $0x5c] sm:$0xf]
    %v125 = vld [vmem:[%s2 + $0x60] sm:$0xf]
    %v126 = vld [vmem:[%s2 + $0x64] sm:$0xf]
    %v127 = vld [vmem:[%s2 + $0x68] sm:$0xf]
    %v128 = vld [vmem:[%s2 + $0x6c] sm:$0xf]
    %v129 = vld [vmem:[%s2 + $0x70] sm:$0xf]
    %v130 = vld [vmem:[%s2 + $0x74] sm:$0xf]
    %v131 = vld [vmem:[%s2 + $0x78] sm:$0xf]
    %v132 = vld [vmem:[%s2 + $0x7c] sm:$0xf]
    %v133 = vld [vmem:[%s2 + $0x80] sm:$0xf]
    %v134 = vld [vmem:[%s2 + $0x84] sm:$0xf]
    %v135 = vld [vmem:[%s2 + $0x88] sm:$0xf]
    %v136 = vld [vmem:[%s2 + $0x8c] sm:$0xf]
    %v137 = vld [vmem:[%s2 + $0x90] sm:$0xf]
    %v138 = vld [vmem:[%s2 + $0x94] sm:$0xf]
    %v139 = vld [vmem:[%s2 + $0x98] sm:$0xf]
    %v140 = vld [vmem:[%s2 + $0x9c] sm:$0xf]
    %v141 = vld [vmem:[%s2 + $0xa0] sm:$0xf]
    %v142 = vld [vmem:[%s2 + $0xa4] sm:$0xf]
    %v143 = vld [vmem:[%s2 + $0xa8] sm:$0xf]
    %v144 = vld [vmem:[%s2 + $0xac] sm:$0xf]
    %v145 = vld [vmem:[%s2 + $0xb0] sm:$0xf]
    %v146 = vld [vmem:[%s2 + $0xb4] sm:$0xf]
    %v147 = vld [vmem:[%s2 + $0xb8] sm:$0xf]
    %v148 = vld [vmem:[%s2 + $0xbc] sm:$0xf]
    %v149 = vld [vmem:[#allocation5] sm:$0xff]
    %v150 = vld [vmem:[#allocation5 + $0x8] sm:$0xff]
    %v151 = vld [vmem:[#allocation5 + $0x10] sm:$0xff]
    %v152 = vld [vmem:[#allocation5 + $0x18] sm:$0xff]
    %v153 = vld [vmem:[#allocation5 + $0x20] sm:$0xff]
    %v154 = vld [vmem:[#allocation5 + $0x28] sm:$0xff]
    %v155 = vld [vmem:[#allocation5 + $0x30] sm:$0xff]
    %v156 = vld [vmem:[#allocation5 + $0x38] sm:$0xff]
    %v157 = vld [vmem:[#allocation5 + $0x40] sm:$0xff]
    %v158 = vld [vmem:[#allocation5 + $0x48] sm:$0xff]
    %v159 = vld [vmem:[#allocation5 + $0x50] sm:$0xff]
    %v160 = vld [vmem:[#allocation5 + $0x58] sm:$0xff]
    %v161 = vld [vmem:[#allocation5 + $0x60] sm:$0xff]
    %v162 = vld [vmem:[#allocation5 + $0x68] sm:$0xff]
    %v163 = vld [vmem:[#allocation5 + $0x70] sm:$0xff]
    %v164 = vld [vmem:[#allocation5 + $0x78] sm:$0xff]
    %v165 = vld [vmem:[#allocation7] sm:$0xff]
    %v166 = vld [vmem:[#allocation7 + $0x8] sm:$0xff]
    %v167 = vld [vmem:[#allocation7 + $0x10] sm:$0xff]
    %v168 = vld [vmem:[#allocation7 + $0x18] sm:$0xff]
    %v169 = vld [vmem:[#allocation7 + $0x20] sm:$0xff]
    %v170 = vld [vmem:[#allocation7 + $0x28] sm:$0xff]
    %v171 = vld [vmem:[#allocation7 + $0x30] sm:$0xff]
    %v172 = vld [vmem:[#allocation7 + $0x38] sm:$0xff]
    %v173 = vld [vmem:[#allocation7 + $0x40] sm:$0xff]
    %v174 = vld [vmem:[#allocation7 + $0x48] sm:$0xff]
    %v175 = vld [vmem:[#allocation7 + $0x50] sm:$0xff]
    %v176 = vld [vmem:[#allocation7 + $0x58] sm:$0xff]
    %v177 = vld [vmem:[#allocation7 + $0x60] sm:$0xff]
    %v178 = vld [vmem:[#allocation7 + $0x68] sm:$0xff]
    %v179 = vld [vmem:[#allocation7 + $0x70] sm:$0xff]
    %v180 = vld [vmem:[#allocation7 + $0x78] sm:$0xff]
    %v181 = vld [vmem:[#allocation7 + $0x80] sm:$0xff]
    %v182 = vld [vmem:[#allocation7 + $0x88] sm:$0xff]
    %v183 = vld [vmem:[#allocation7 + $0x90] sm:$0xff]
    %v184 = vld [vmem:[#allocation7 + $0x98] sm:$0xff]
    %v185 = vld [vmem:[#allocation7 + $0xa0] sm:$0xff]
    %v186 = vld [vmem:[#allocation7 + $0xa8] sm:$0xff]
    %v187 = vld [vmem:[#allocation7 + $0xb0] sm:$0xff]
    %v188 = vld [vmem:[#allocation7 + $0xb8] sm:$0xff]
    %v189 = vld [vmem:[#allocation7 + $0xc0] sm:$0xff]
    %v190 = vld [vmem:[#allocation7 + $0xc8] sm:$0xff]
    %v191 = vld [vmem:[#allocation7 + $0xd0] sm:$0xff]
    %v192 = vld [vmem:[#allocation7 + $0xd8] sm:$0xff]
    %v193 = vld [vmem:[#allocation7 + $0xe0] sm:$0xff]
    %v194 = vld [vmem:[#allocation7 + $0xe8] sm:$0xff]
    %v195 = vld [vmem:[#allocation7 + $0xf0] sm:$0xff]
    %v196 = vld [vmem:[#allocation7 + $0xf8] sm:$0xff]
    %v197 = vld [vmem:[#allocation7 + $0x100] sm:$0xff]
    %v198 = vld [vmem:[#allocation7 + $0x108] sm:$0xff]
    %v199 = vld [vmem:[#allocation7 + $0x110] sm:$0xff]
    %v200 = vld [vmem:[#allocation7 + $0x118] sm:$0xff]
    %v201 = vld [vmem:[#allocation7 + $0x120] sm:$0xff]
    %v202 = vld [vmem:[#allocation7 + $0x128] sm:$0xff]
    %v203 = vld [vmem:[#allocation7 + $0x130] sm:$0xff]
    %v204 = vld [vmem:[#allocation7 + $0x138] sm:$0xff]
    %v205 = vld [vmem:[#allocation7 + $0x140] sm:$0xff]
    %v206 = vld [vmem:[#allocation7 + $0x148] sm:$0xff]
    %v207 = vld [vmem:[#allocation7 + $0x150] sm:$0xff]
    %v208 = vld [vmem:[#allocation7 + $0x158] sm:$0xff]
    %v209 = vld [vmem:[#allocation7 + $0x160] sm:$0xff]
    %v210 = vld [vmem:[#allocation7 + $0x168] sm:$0xff]
    %v211 = vld [vmem:[#allocation7 + $0x170] sm:$0xff]
    %v212 = vld [vmem:[#allocation7 + $0x178] sm:$0xff]
    %v213 = vlaneseq
    %v214 = vand.u32 %v213, 127
    %vm215 = vcmp.lt.s32.totalorder %v214, 64
    %v216 = vlaneseq
    %v217 = vshrl.u32 %v216, 7
    %v218 = vadd.s32 %v217, 8
    %v219 = vadd.s32 %v217, 16
    %v220 = vadd.s32 %v217, 24
    %v221 = vadd.s32 %v217, 32
    %v222 = vadd.s32 %v217, 40
    %v223 = vadd.s32 %v217, 48
    %v224 = vadd.s32 %v217, 56
    %v225 = vadd.s32 %v217, 64
    %v226 = vadd.s32 %v217, 72
    %v227 = vadd.s32 %v217, 80
    %v228 = vadd.s32 %v217, 88
    %v229 = vadd.s32 %v217, 96
    %v230 = vadd.s32 %v217, 104
    %v231 = vadd.s32 %v217, 112
    %v232 = vadd.s32 %v217, 120
    %vm233 = vcmp.lt.s32.totalorder %v217, 64
    %vm234 = vcmp.lt.s32.totalorder %v218, 64
    %vm235 = vcmp.lt.s32.totalorder %v219, 64
    %vm236 = vcmp.lt.s32.totalorder %v220, 64
    %vm237 = vcmp.lt.s32.totalorder %v221, 64
    %vm238 = vcmp.lt.s32.totalorder %v222, 64
    %vm239 = vcmp.lt.s32.totalorder %v223, 64
    %vm240 = vcmp.lt.s32.totalorder %v224, 64
    %vm241 = vcmp.lt.s32.totalorder %v225, 64
    %vm242 = vcmp.lt.s32.totalorder %v226, 64
    %vm243 = vcmp.lt.s32.totalorder %v227, 64
    %vm244 = vcmp.lt.s32.totalorder %v228, 64
    %vm245 = vcmp.lt.s32.totalorder %v229, 64
    %vm246 = vcmp.lt.s32.totalorder %v230, 64
    %vm247 = vcmp.lt.s32.totalorder %v231, 64
    %vm248 = vcmp.lt.s32.totalorder %v232, 64
    %vm249 = vmxor %vm215, %vm233
    %vm250 = vmxor %vm215, %vm234
    %vm251 = vmxor %vm215, %vm235
    %vm252 = vmxor %vm215, %vm236
    %vm253 = vmxor %vm215, %vm237
    %vm254 = vmxor %vm215, %vm238
    %vm255 = vmxor %vm215, %vm239
    %vm256 = vmxor %vm215, %vm240
    %vm257 = vmxor %vm215, %vm241
    %vm258 = vmxor %vm215, %vm242
    %vm259 = vmxor %vm215, %vm243
    %vm260 = vmxor %vm215, %vm244
    %vm261 = vmxor %vm215, %vm245
    %vm262 = vmxor %vm215, %vm246
    %vm263 = vmxor %vm215, %vm247
    %vm264 = vmxor %vm215, %vm248
    %vm265 = vmxor %vm249, 1
    %vm266 = vmxor %vm250, 1
    %vm267 = vmxor %vm251, 1
    %vm268 = vmxor %vm252, 1
    %vm269 = vmxor %vm253, 1
    %vm270 = vmxor %vm254, 1
    %vm271 = vmxor %vm255, 1
    %vm272 = vmxor %vm256, 1
    %vm273 = vmxor %vm257, 1
    %vm274 = vmxor %vm258, 1
    %vm275 = vmxor %vm259, 1
    %vm276 = vmxor %vm260, 1
    %vm277 = vmxor %vm261, 1
    %vm278 = vmxor %vm262, 1
    %vm279 = vmxor %vm263, 1
    %vm280 = vmxor %vm264, 1
    %v281 = vld [vmem:[#allocation2] sm:$0xff]
    %v282 = vld [vmem:[#allocation2 + $0x8] sm:$0xff]
    %v283 = vld [vmem:[#allocation2 + $0x10] sm:$0xff]
    %v284 = vld [vmem:[#allocation2 + $0x18] sm:$0xff]
    %v285 = vld [vmem:[#allocation2 + $0x20] sm:$0xff]
    %v286 = vld [vmem:[#allocation2 + $0x28] sm:$0xff]
    %v287 = vld [vmem:[#allocation2 + $0x30] sm:$0xff]
    %v288 = vld [vmem:[#allocation2 + $0x38] sm:$0xff]
    %v289 = vpack.c.bf16 %v282, %v281
    %v290 = vpack.c.bf16 %v284, %v283
    %v291 = vpack.c.bf16 %v286, %v285
    %v292 = vpack.c.bf16 %v288, %v287
    %v309 = vunpack.c.l.b16 %v69
    %v310 = vunpack.c.l.b16 %v70
    %v311 = vunpack.c.l.b16 %v71
    %v312 = vunpack.c.l.b16 %v72
    %v313 = vunpack.c.l.b16 %v73
    %v314 = vunpack.c.l.b16 %v74
    %v315 = vunpack.c.l.b16 %v75
    %v316 = vunpack.c.l.b16 %v76
    %v317 = vunpack.c.l.b16 %v77
    %v318 = vunpack.c.l.b16 %v78
    %v319 = vunpack.c.l.b16 %v79
    %v320 = vunpack.c.l.b16 %v80
    %v321 = vunpack.c.l.b16 %v81
    %v322 = vunpack.c.l.b16 %v82
    %v323 = vunpack.c.l.b16 %v83
    %v324 = vunpack.c.l.b16 %v84
    %v325 = vpack.c.b16 %v310, %v309
    %v326 = vpack.c.b16 %v312, %v311
    %v327 = vpack.c.b16 %v314, %v313
    %v328 = vpack.c.b16 %v316, %v315
    %v329 = vpack.c.b16 %v318, %v317
    %v330 = vpack.c.b16 %v320, %v319
    %v331 = vpack.c.b16 %v322, %v321
    %v332 = vpack.c.b16 %v324, %v323
    %vm333 = vcmask 523264
    %v335 = vsel %vm333, %v325, 0
    %v338 = vsel %vm333, %v326, 0
    %v341 = vsel %vm333, %v327, 0
    %v344 = vsel %vm333, %v328, 0
    %v347 = vsel %vm333, %v329, 0
    %v350 = vsel %vm333, %v330, 0
    %v353 = vsel %vm333, %v331, 0
    %v356 = vsel %vm333, %v332, 0
    %358 = vmatpush.bf16.msra.mxu0 0
    %359 = vmatpush.bf16.msra.mxu0 0
    %360 = vmatpush.bf16.msra.mxu0 0
    %361 = vmatpush.bf16.msra.mxu0 0
    %362 = vmatpush.bf16.msra.mxu0 %v292
    %363 = vmatpush.bf16.msra.mxu0 %v291
    %364 = vmatpush.bf16.msra.mxu0 %v290
    %365 = vmatpush.bf16.msra.mxu0 %v289
    %366 = vmatmul.bf16.gmra.mxu0 %v335
    %v367 = vpop.f32.mrf.mxu0
    %v368 = vadd.f32 0.0, %v367
    %v369 = vpop.f32.mrf.mxu0
    %v370 = vadd.f32 0.0, %v369
    %371 = vmatmul.bf16.gmra.mxu0 %v338
    %v372 = vpop.f32.mrf.mxu0
    %v373 = vadd.f32 0.0, %v372
    %v374 = vpop.f32.mrf.mxu0
    %v375 = vadd.f32 0.0, %v374
    %376 = vmatmul.bf16.gmra.mxu0 %v341
    %v377 = vpop.f32.mrf.mxu0
    %v378 = vadd.f32 0.0, %v377
    %v379 = vpop.f32.mrf.mxu0
    %v380 = vadd.f32 0.0, %v379
    %381 = vmatmul.bf16.gmra.mxu0 %v344
    %v382 = vpop.f32.mrf.mxu0
    %v383 = vadd.f32 0.0, %v382
    %v384 = vpop.f32.mrf.mxu0
    %v385 = vadd.f32 0.0, %v384
    %386 = vmatmul.bf16.gmra.mxu0 %v347
    %v387 = vpop.f32.mrf.mxu0
    %v388 = vadd.f32 0.0, %v387
    %v389 = vpop.f32.mrf.mxu0
    %v390 = vadd.f32 0.0, %v389
    %391 = vmatmul.bf16.gmra.mxu0 %v350
    %v392 = vpop.f32.mrf.mxu0
    %v393 = vadd.f32 0.0, %v392
    %v394 = vpop.f32.mrf.mxu0
    %v395 = vadd.f32 0.0, %v394
    %396 = vmatmul.bf16.gmra.mxu0 %v353
    %v397 = vpop.f32.mrf.mxu0
    %v398 = vadd.f32 0.0, %v397
    %v399 = vpop.f32.mrf.mxu0
    %v400 = vadd.f32 0.0, %v399
    %401 = vmatmul.bf16.gmra.mxu0 %v356
    %v402 = vpop.f32.mrf.mxu0
    %v403 = vadd.f32 0.0, %v402
    %v404 = vpop.f32.mrf.mxu0
    %v405 = vadd.f32 0.0, %v404
    %406 = vdwg.mxu0
    %407 = vrot.lane.b32.xlu0 %v368, 64
    %v408 = vpop.permute.xlu0 %407
    %409 = vrot.lane.b32.xlu0 %v370, 64
    %v410 = vpop.permute.xlu0 %409
    %411 = vrot.lane.b32.xlu0 %v373, 64
    %v412 = vpop.permute.xlu0 %411
    %413 = vrot.lane.b32.xlu0 %v375, 64
    %v414 = vpop.permute.xlu0 %413
    %415 = vrot.lane.b32.xlu0 %v378, 64
    %v416 = vpop.permute.xlu0 %415
    %417 = vrot.lane.b32.xlu0 %v380, 64
    %v418 = vpop.permute.xlu0 %417
    %419 = vrot.lane.b32.xlu0 %v383, 64
    %v420 = vpop.permute.xlu0 %419
    %421 = vrot.lane.b32.xlu0 %v385, 64
    %v422 = vpop.permute.xlu0 %421
    %423 = vrot.lane.b32.xlu0 %v388, 64
    %v424 = vpop.permute.xlu0 %423
    %425 = vrot.lane.b32.xlu0 %v390, 64
    %v426 = vpop.permute.xlu0 %425
    %427 = vrot.lane.b32.xlu0 %v393, 64
    %v428 = vpop.permute.xlu0 %427
    %429 = vrot.lane.b32.xlu0 %v395, 64
    %v430 = vpop.permute.xlu0 %429
    %431 = vrot.lane.b32.xlu0 %v398, 64
    %v432 = vpop.permute.xlu0 %431
    %433 = vrot.lane.b32.xlu0 %v400, 64
    %v434 = vpop.permute.xlu0 %433
    %435 = vrot.lane.b32.xlu0 %v403, 64
    %v436 = vpop.permute.xlu0 %435
    %437 = vrot.lane.b32.xlu0 %v405, 64
    %v438 = vpop.permute.xlu0 %437
    %v439 = vsel %vm265, %v368, %v424
    %v440 = vsel %vm266, %v370, %v426
    %v441 = vsel %vm267, %v373, %v428
    %v442 = vsel %vm268, %v375, %v430
    %v443 = vsel %vm269, %v378, %v432
    %v444 = vsel %vm270, %v380, %v434
    %v445 = vsel %vm271, %v383, %v436
    %v446 = vsel %vm272, %v385, %v438
    %v447 = vsel %vm273, %v388, %v408
    %v448 = vsel %vm274, %v390, %v410
    %v449 = vsel %vm275, %v393, %v412
    %v450 = vsel %vm276, %v395, %v414
    %v451 = vsel %vm277, %v398, %v416
    %v452 = vsel %vm278, %v400, %v418
    %v453 = vsel %vm279, %v403, %v420
    %v454 = vsel %vm280, %v405, %v422
    %v455 = vpack.c.bf16 %v440, %v439
    %v456 = vpack.c.bf16 %v442, %v441
    %v457 = vpack.c.bf16 %v444, %v443
    %v458 = vpack.c.bf16 %v446, %v445
    %v459 = vpack.c.bf16 %v448, %v447
    %v460 = vpack.c.bf16 %v450, %v449
    %v461 = vpack.c.bf16 %v452, %v451
    %v462 = vpack.c.bf16 %v454, %v453
    %v479 = vunpack.c.l.b16 %v101
    %v480 = vunpack.c.l.b16 %v102
    %v481 = vunpack.c.l.b16 %v103
    %v482 = vunpack.c.l.b16 %v104
    %v483 = vunpack.c.l.b16 %v105
    %v484 = vunpack.c.l.b16 %v106
    %v485 = vunpack.c.l.b16 %v107
    %v486 = vunpack.c.l.b16 %v108
    %v487 = vunpack.c.l.b16 %v109
    %v488 = vunpack.c.l.b16 %v110
    %v489 = vunpack.c.l.b16 %v111
    %v490 = vunpack.c.l.b16 %v112
    %v491 = vunpack.c.l.b16 %v113
    %v492 = vunpack.c.l.b16 %v114
    %v493 = vunpack.c.l.b16 %v115
    %v494 = vunpack.c.l.b16 %v116
    %v495 = vpack.c.b16 %v480, %v479
    %v496 = vpack.c.b16 %v482, %v481
    %v497 = vpack.c.b16 %v484, %v483
    %v498 = vpack.c.b16 %v486, %v485
    %v499 = vpack.c.b16 %v488, %v487
    %v500 = vpack.c.b16 %v490, %v489
    %v501 = vpack.c.b16 %v492, %v491
    %v502 = vpack.c.b16 %v494, %v493
    %511 = vmatpush.bf16.msra.mxu0 %v502
    %512 = vmatpush.bf16.msra.mxu0 %v501
    %513 = vmatpush.bf16.msra.mxu0 %v500
    %514 = vmatpush.bf16.msra.mxu0 %v499
    %515 = vmatpush.bf16.msra.mxu0 %v498
    %516 = vmatpush.bf16.msra.mxu0 %v497
    %517 = vmatpush.bf16.msra.mxu0 %v496
    %518 = vmatpush.bf16.msra.mxu0 %v495
    %519 = vmatmul.bf16.gmra.mxu0 %v455
    %v520 = vpop.f32.mrf.mxu0
    %v521 = vadd.f32 0.0, %v520
    %v522 = vpop.f32.mrf.mxu0
    %v523 = vadd.f32 0.0, %v522
    %524 = vmatmul.bf16.gmra.mxu0 %v456
    %v525 = vpop.f32.mrf.mxu0
    %v526 = vadd.f32 0.0, %v525
    %v527 = vpop.f32.mrf.mxu0
    %v528 = vadd.f32 0.0, %v527
    %529 = vmatmul.bf16.gmra.mxu0 %v457
    %v530 = vpop.f32.mrf.mxu0
    %v531 = vadd.f32 0.0, %v530
    %v532 = vpop.f32.mrf.mxu0
    %v533 = vadd.f32 0.0, %v532
    %534 = vmatmul.bf16.gmra.mxu0 %v458
    %v535 = vpop.f32.mrf.mxu0
    %v536 = vadd.f32 0.0, %v535
    %v537 = vpop.f32.mrf.mxu0
    %v538 = vadd.f32 0.0, %v537
    %539 = vmatmul.bf16.gmra.mxu0 %v459
    %v540 = vpop.f32.mrf.mxu0
    %v541 = vadd.f32 0.0, %v540
    %v542 = vpop.f32.mrf.mxu0
    %v543 = vadd.f32 0.0, %v542
    %544 = vmatmul.bf16.gmra.mxu0 %v460
    %v545 = vpop.f32.mrf.mxu0
    %v546 = vadd.f32 0.0, %v545
    %v547 = vpop.f32.mrf.mxu0
    %v548 = vadd.f32 0.0, %v547
    %549 = vmatmul.bf16.gmra.mxu0 %v461
    %v550 = vpop.f32.mrf.mxu0
    %v551 = vadd.f32 0.0, %v550
    %v552 = vpop.f32.mrf.mxu0
    %v553 = vadd.f32 0.0, %v552
    %554 = vmatmul.bf16.gmra.mxu0 %v462
    %v555 = vpop.f32.mrf.mxu0
    %v556 = vadd.f32 0.0, %v555
    %v557 = vpop.f32.mrf.mxu0
    %v558 = vadd.f32 0.0, %v557
    %559 = vdwg.mxu0
    %v560 = vpack.c.bf16 %v523, %v521
    %v561 = vpack.c.bf16 %v528, %v526
    %v562 = vpack.c.bf16 %v533, %v531
    %v563 = vpack.c.bf16 %v538, %v536
    %v564 = vpack.c.bf16 %v543, %v541
    %v565 = vpack.c.bf16 %v548, %v546
    %v566 = vpack.c.bf16 %v553, %v551
    %v567 = vpack.c.bf16 %v558, %v556
    %v584 = vunpack.c.l.b16 %v149
    %v585 = vunpack.c.h.b16 %v149
    %v586 = vunpack.c.l.b16 %v150
    %v587 = vunpack.c.h.b16 %v150
    %v588 = vunpack.c.l.b16 %v151
    %v589 = vunpack.c.h.b16 %v151
    %v590 = vunpack.c.l.b16 %v152
    %v591 = vunpack.c.h.b16 %v152
    %v592 = vunpack.c.l.b16 %v153
    %v593 = vunpack.c.h.b16 %v153
    %v594 = vunpack.c.l.b16 %v154
    %v595 = vunpack.c.h.b16 %v154
    %v596 = vunpack.c.l.b16 %v155
    %v597 = vunpack.c.h.b16 %v155
    %v598 = vunpack.c.l.b16 %v156
    %v599 = vunpack.c.h.b16 %v156
    %v600 = vunpack.c.l.b16 %v157
    %v601 = vunpack.c.h.b16 %v157
    %v602 = vunpack.c.l.b16 %v158
    %v603 = vunpack.c.h.b16 %v158
    %v604 = vunpack.c.l.b16 %v159
    %v605 = vunpack.c.h.b16 %v159
    %v606 = vunpack.c.l.b16 %v160
    %v607 = vunpack.c.h.b16 %v160
    %v608 = vunpack.c.l.b16 %v161
    %v609 = vunpack.c.h.b16 %v161
    %v610 = vunpack.c.l.b16 %v162
    %v611 = vunpack.c.h.b16 %v162
    %v612 = vunpack.c.l.b16 %v163
    %v613 = vunpack.c.h.b16 %v163
    %v614 = vunpack.c.l.b16 %v164
    %v615 = vunpack.c.h.b16 %v164
    %v616 = vpack.c.b16 %v586, %v584
    %v617 = vpack.c.b16 %v587, %v585
    %v618 = vpack.c.b16 %v590, %v588
    %v619 = vpack.c.b16 %v591, %v589
    %v620 = vpack.c.b16 %v594, %v592
    %v621 = vpack.c.b16 %v595, %v593
    %v622 = vpack.c.b16 %v598, %v596
    %v623 = vpack.c.b16 %v599, %v597
    %v624 = vpack.c.b16 %v602, %v600
    %v625 = vpack.c.b16 %v603, %v601
    %v626 = vpack.c.b16 %v606, %v604
    %v627 = vpack.c.b16 %v607, %v605
    %v628 = vpack.c.b16 %v610, %v608
    %v629 = vpack.c.b16 %v611, %v609
    %v630 = vpack.c.b16 %v614, %v612
    %v631 = vpack.c.b16 %v615, %v613
    %648 = vmatpush.bf16.msra.mxu0 %v630
    %649 = vmatpush.bf16.msra.mxu0 %v628
    %650 = vmatpush.bf16.msra.mxu0 %v626
    %651 = vmatpush.bf16.msra.mxu0 %v624
    %652 = vmatpush.bf16.msra.mxu0 %v622
    %653 = vmatpush.bf16.msra.mxu0 %v620
    %654 = vmatpush.bf16.msra.mxu0 %v618
    %655 = vmatpush.bf16.msra.mxu0 %v616
    %656 = vmatmul.bf16.gmra.mxu0 %v560
    %v657 = vpop.f32.mrf.mxu0
    %v658 = vadd.f32 0.0, %v657
    %v659 = vpop.f32.mrf.mxu0
    %v660 = vadd.f32 0.0, %v659
    %661 = vmatmul.bf16.gmra.mxu0 %v561
    %v662 = vpop.f32.mrf.mxu0
    %v663 = vadd.f32 0.0, %v662
    %v664 = vpop.f32.mrf.mxu0
    %v665 = vadd.f32 0.0, %v664
    %666 = vmatmul.bf16.gmra.mxu0 %v562
    %v667 = vpop.f32.mrf.mxu0
    %v668 = vadd.f32 0.0, %v667
    %v669 = vpop.f32.mrf.mxu0
    %v670 = vadd.f32 0.0, %v669
    %671 = vmatmul.bf16.gmra.mxu0 %v563
    %v672 = vpop.f32.mrf.mxu0
    %v673 = vadd.f32 0.0, %v672
    %v674 = vpop.f32.mrf.mxu0
    %v675 = vadd.f32 0.0, %v674
    %676 = vmatmul.bf16.gmra.mxu0 %v564
    %v677 = vpop.f32.mrf.mxu0
    %v678 = vadd.f32 0.0, %v677
    %v679 = vpop.f32.mrf.mxu0
    %v680 = vadd.f32 0.0, %v679
    %681 = vmatmul.bf16.gmra.mxu0 %v565
    %v682 = vpop.f32.mrf.mxu0
    %v683 = vadd.f32 0.0, %v682
    %v684 = vpop.f32.mrf.mxu0
    %v685 = vadd.f32 0.0, %v684
    %686 = vmatmul.bf16.gmra.mxu0 %v566
    %v687 = vpop.f32.mrf.mxu0
    %v688 = vadd.f32 0.0, %v687
    %v689 = vpop.f32.mrf.mxu0
    %v690 = vadd.f32 0.0, %v689
    %691 = vmatmul.bf16.gmra.mxu0 %v567
    %v692 = vpop.f32.mrf.mxu0
    %v693 = vadd.f32 0.0, %v692
    %v694 = vpop.f32.mrf.mxu0
    %v695 = vadd.f32 0.0, %v694
    %696 = vdwg.mxu0
    %697 = vmatpush.bf16.msra.mxu0 %v631
    %698 = vmatpush.bf16.msra.mxu0 %v629
    %699 = vmatpush.bf16.msra.mxu0 %v627
    %700 = vmatpush.bf16.msra.mxu0 %v625
    %701 = vmatpush.bf16.msra.mxu0 %v623
    %702 = vmatpush.bf16.msra.mxu0 %v621
    %703 = vmatpush.bf16.msra.mxu0 %v619
    %704 = vmatpush.bf16.msra.mxu0 %v617
    %705 = vmatmul.bf16.gmra.mxu0 %v560
    %v706 = vpop.f32.mrf.mxu0
    %v707 = vadd.f32 0.0, %v706
    %v708 = vpop.f32.mrf.mxu0
    %v709 = vadd.f32 0.0, %v708
    %710 = vmatmul.bf16.gmra.mxu0 %v561
    %v711 = vpop.f32.mrf.mxu0
    %v712 = vadd.f32 0.0, %v711
    %v713 = vpop.f32.mrf.mxu0
    %v714 = vadd.f32 0.0, %v713
    %715 = vmatmul.bf16.gmra.mxu0 %v562
    %v716 = vpop.f32.mrf.mxu0
    %v717 = vadd.f32 0.0, %v716
    %v718 = vpop.f32.mrf.mxu0
    %v719 = vadd.f32 0.0, %v718
    %720 = vmatmul.bf16.gmra.mxu0 %v563
    %v721 = vpop.f32.mrf.mxu0
    %v722 = vadd.f32 0.0, %v721
    %v723 = vpop.f32.mrf.mxu0
    %v724 = vadd.f32 0.0, %v723
    %725 = vmatmul.bf16.gmra.mxu0 %v564
    %v726 = vpop.f32.mrf.mxu0
    %v727 = vadd.f32 0.0, %v726
    %v728 = vpop.f32.mrf.mxu0
    %v729 = vadd.f32 0.0, %v728
    %730 = vmatmul.bf16.gmra.mxu0 %v565
    %v731 = vpop.f32.mrf.mxu0
    %v732 = vadd.f32 0.0, %v731
    %v733 = vpop.f32.mrf.mxu0
    %v734 = vadd.f32 0.0, %v733
    %735 = vmatmul.bf16.gmra.mxu0 %v566
    %v736 = vpop.f32.mrf.mxu0
    %v737 = vadd.f32 0.0, %v736
    %v738 = vpop.f32.mrf.mxu0
    %v739 = vadd.f32 0.0, %v738
    %740 = vmatmul.bf16.gmra.mxu0 %v567
    %v741 = vpop.f32.mrf.mxu0
    %v742 = vadd.f32 0.0, %v741
    %v743 = vpop.f32.mrf.mxu0
    %v744 = vadd.f32 0.0, %v743
    %745 = vdwg.mxu0
    %746 = vrot.lane.b32.xlu0 %v658, 64
    %v747 = vpop.permute.xlu0 %746
    %748 = vrot.lane.b32.xlu0 %v660, 64
    %v749 = vpop.permute.xlu0 %748
    %750 = vrot.lane.b32.xlu0 %v663, 64
    %v751 = vpop.permute.xlu0 %750
    %752 = vrot.lane.b32.xlu0 %v665, 64
    %v753 = vpop.permute.xlu0 %752
    %754 = vrot.lane.b32.xlu0 %v668, 64
    %v755 = vpop.permute.xlu0 %754
    %756 = vrot.lane.b32.xlu0 %v670, 64
    %v757 = vpop.permute.xlu0 %756
    %758 = vrot.lane.b32.xlu0 %v673, 64
    %v759 = vpop.permute.xlu0 %758
    %760 = vrot.lane.b32.xlu0 %v675, 64
    %v761 = vpop.permute.xlu0 %760
    %762 = vrot.lane.b32.xlu0 %v678, 64
    %v763 = vpop.permute.xlu0 %762
    %764 = vrot.lane.b32.xlu0 %v680, 64
    %v765 = vpop.permute.xlu0 %764
    %766 = vrot.lane.b32.xlu0 %v683, 64
    %v767 = vpop.permute.xlu0 %766
    %768 = vrot.lane.b32.xlu0 %v685, 64
    %v769 = vpop.permute.xlu0 %768
    %770 = vrot.lane.b32.xlu0 %v688, 64
    %v771 = vpop.permute.xlu0 %770
    %772 = vrot.lane.b32.xlu0 %v690, 64
    %v773 = vpop.permute.xlu0 %772
    %774 = vrot.lane.b32.xlu0 %v693, 64
    %v775 = vpop.permute.xlu0 %774
    %776 = vrot.lane.b32.xlu0 %v695, 64
    %v777 = vpop.permute.xlu0 %776
    %v778 = vsel %vm265, %v658, %v763
    %v779 = vsel %vm266, %v660, %v765
    %v780 = vsel %vm267, %v663, %v767
    %v781 = vsel %vm268, %v665, %v769
    %v782 = vsel %vm269, %v668, %v771
    %v783 = vsel %vm270, %v670, %v773
    %v784 = vsel %vm271, %v673, %v775
    %v785 = vsel %vm272, %v675, %v777
    %v786 = vsel %vm273, %v678, %v747
    %v787 = vsel %vm274, %v680, %v749
    %v788 = vsel %vm275, %v683, %v751
    %v789 = vsel %vm276, %v685, %v753
    %v790 = vsel %vm277, %v688, %v755
    %v791 = vsel %vm278, %v690, %v757
    %v792 = vsel %vm279, %v693, %v759
    %v793 = vsel %vm280, %v695, %v761
    %v794 = vpack.c.bf16 %v779, %v778
    %v795 = vpack.c.bf16 %v781, %v780
    %v796 = vpack.c.bf16 %v783, %v782
    %v797 = vpack.c.bf16 %v785, %v784
    %v798 = vpack.c.bf16 %v787, %v786
    %v799 = vpack.c.bf16 %v789, %v788
    %v800 = vpack.c.bf16 %v791, %v790
    %v801 = vpack.c.bf16 %v793, %v792
    %v810 = vunpack.c.l.b16 %v133
    %v811 = vunpack.c.l.b16 %v134
    %v812 = vunpack.c.l.b16 %v135
    %v813 = vunpack.c.l.b16 %v136
    %v814 = vunpack.c.l.b16 %v137
    %v815 = vunpack.c.l.b16 %v138
    %v816 = vunpack.c.l.b16 %v139
    %v817 = vunpack.c.l.b16 %v140
    %v818 = vpack.c.b16 %v811, %v810
    %v819 = vpack.c.b16 %v813, %v812
    %v820 = vpack.c.b16 %v815, %v814
    %v821 = vpack.c.b16 %v817, %v816
    %826 = vmatpush.bf16.msra.mxu0 %v801
    %827 = vmatpush.bf16.msra.mxu0 %v800
    %828 = vmatpush.bf16.msra.mxu0 %v799
    %829 = vmatpush.bf16.msra.mxu0 %v798
    %830 = vmatpush.bf16.msra.mxu0 %v797
    %831 = vmatpush.bf16.msra.mxu0 %v796
    %832 = vmatpush.bf16.msra.mxu0 %v795
    %833 = vmatpush.bf16.msra.mxu0 %v794
    %834 = vmatmul.bf16.gmra.mxu0 %v818
    %v835 = vpop.f32.mrf.mxu0
    %v836 = vadd.f32 0.0, %v835
    %v837 = vpop.f32.mrf.mxu0
    %v838 = vadd.f32 0.0, %v837
    %839 = vmatmul.bf16.gmra.mxu0 %v819
    %v840 = vpop.f32.mrf.mxu0
    %v841 = vadd.f32 0.0, %v840
    %v842 = vpop.f32.mrf.mxu0
    %v843 = vadd.f32 0.0, %v842
    %844 = vmatmul.bf16.gmra.mxu0 %v820
    %v845 = vpop.f32.mrf.mxu0
    %v846 = vadd.f32 0.0, %v845
    %v847 = vpop.f32.mrf.mxu0
    %v848 = vadd.f32 0.0, %v847
    %849 = vmatmul.bf16.gmra.mxu0 %v821
    %v850 = vpop.f32.mrf.mxu0
    %v851 = vadd.f32 0.0, %v850
    %v852 = vpop.f32.mrf.mxu0
    %v853 = vadd.f32 0.0, %v852
    %854 = vdwg.mxu0
    %855 = vrot.lane.b32.xlu0 %v707, 64
    %v856 = vpop.permute.xlu0 %855
    %857 = vrot.lane.b32.xlu0 %v709, 64
    %v858 = vpop.permute.xlu0 %857
    %859 = vrot.lane.b32.xlu0 %v712, 64
    %v860 = vpop.permute.xlu0 %859
    %861 = vrot.lane.b32.xlu0 %v714, 64
    %v862 = vpop.permute.xlu0 %861
    %863 = vrot.lane.b32.xlu0 %v717, 64
    %v864 = vpop.permute.xlu0 %863
    %865 = vrot.lane.b32.xlu0 %v719, 64
    %v866 = vpop.permute.xlu0 %865
    %867 = vrot.lane.b32.xlu0 %v722, 64
    %v868 = vpop.permute.xlu0 %867
    %869 = vrot.lane.b32.xlu0 %v724, 64
    %v870 = vpop.permute.xlu0 %869
    %871 = vrot.lane.b32.xlu0 %v727, 64
    %v872 = vpop.permute.xlu0 %871
    %873 = vrot.lane.b32.xlu0 %v729, 64
    %v874 = vpop.permute.xlu0 %873
    %875 = vrot.lane.b32.xlu0 %v732, 64
    %v876 = vpop.permute.xlu0 %875
    %877 = vrot.lane.b32.xlu0 %v734, 64
    %v878 = vpop.permute.xlu0 %877
    %879 = vrot.lane.b32.xlu0 %v737, 64
    %v880 = vpop.permute.xlu0 %879
    %881 = vrot.lane.b32.xlu0 %v739, 64
    %v882 = vpop.permute.xlu0 %881
    %883 = vrot.lane.b32.xlu0 %v742, 64
    %v884 = vpop.permute.xlu0 %883
    %885 = vrot.lane.b32.xlu0 %v744, 64
    %v886 = vpop.permute.xlu0 %885
    %v887 = vsel %vm265, %v707, %v872
    %v888 = vsel %vm266, %v709, %v874
    %v889 = vsel %vm267, %v712, %v876
    %v890 = vsel %vm268, %v714, %v878
    %v891 = vsel %vm269, %v717, %v880
    %v892 = vsel %vm270, %v719, %v882
    %v893 = vsel %vm271, %v722, %v884
    %v894 = vsel %vm272, %v724, %v886
    %v895 = vsel %vm273, %v727, %v856
    %v896 = vsel %vm274, %v729, %v858
    %v897 = vsel %vm275, %v732, %v860
    %v898 = vsel %vm276, %v734, %v862
    %v899 = vsel %vm277, %v737, %v864
    %v900 = vsel %vm278, %v739, %v866
    %v901 = vsel %vm279, %v742, %v868
    %v902 = vsel %vm280, %v744, %v870
    %v903 = vpack.c.bf16 %v888, %v887
    %v904 = vpack.c.bf16 %v890, %v889
    %v905 = vpack.c.bf16 %v892, %v891
    %v906 = vpack.c.bf16 %v894, %v893
    %v907 = vpack.c.bf16 %v896, %v895
    %v908 = vpack.c.bf16 %v898, %v897
    %v909 = vpack.c.bf16 %v900, %v899
    %v910 = vpack.c.bf16 %v902, %v901
    %v919 = vunpack.c.l.b16 %v141
    %v920 = vunpack.c.l.b16 %v142
    %v921 = vunpack.c.l.b16 %v143
    %v922 = vunpack.c.l.b16 %v144
    %v923 = vunpack.c.l.b16 %v145
    %v924 = vunpack.c.l.b16 %v146
    %v925 = vunpack.c.l.b16 %v147
    %v926 = vunpack.c.l.b16 %v148
    %v927 = vpack.c.b16 %v920, %v919
    %v928 = vpack.c.b16 %v922, %v921
    %v929 = vpack.c.b16 %v924, %v923
    %v930 = vpack.c.b16 %v926, %v925
    %935 = vmatpush.bf16.msra.mxu0 %v910
    %936 = vmatpush.bf16.msra.mxu0 %v909
    %937 = vmatpush.bf16.msra.mxu0 %v908
    %938 = vmatpush.bf16.msra.mxu0 %v907
    %939 = vmatpush.bf16.msra.mxu0 %v906
    %940 = vmatpush.bf16.msra.mxu0 %v905
    %941 = vmatpush.bf16.msra.mxu0 %v904
    %942 = vmatpush.bf16.msra.mxu0 %v903
    %943 = vmatmul.bf16.gmra.mxu0 %v927
    %v944 = vpop.f32.mrf.mxu0
    %v945 = vadd.f32 0.0, %v944
    %v946 = vpop.f32.mrf.mxu0
    %v947 = vadd.f32 0.0, %v946
    %948 = vmatmul.bf16.gmra.mxu0 %v928
    %v949 = vpop.f32.mrf.mxu0
    %v950 = vadd.f32 0.0, %v949
    %v951 = vpop.f32.mrf.mxu0
    %v952 = vadd.f32 0.0, %v951
    %953 = vmatmul.bf16.gmra.mxu0 %v929
    %v954 = vpop.f32.mrf.mxu0
    %v955 = vadd.f32 0.0, %v954
    %v956 = vpop.f32.mrf.mxu0
    %v957 = vadd.f32 0.0, %v956
    %958 = vmatmul.bf16.gmra.mxu0 %v930
    %v959 = vpop.f32.mrf.mxu0
    %v960 = vadd.f32 0.0, %v959
    %v961 = vpop.f32.mrf.mxu0
    %v962 = vadd.f32 0.0, %v961
    %963 = vdwg.mxu0
    %964 = vrot.lane.b32.xlu0 %v281, 64
    %v965 = vpop.permute.xlu0 %964
    %966 = vrot.lane.b32.xlu0 %v282, 64
    %v967 = vpop.permute.xlu0 %966
    %968 = vrot.lane.b32.xlu0 %v283, 64
    %v969 = vpop.permute.xlu0 %968
    %970 = vrot.lane.b32.xlu0 %v284, 64
    %v971 = vpop.permute.xlu0 %970
    %972 = vrot.lane.b32.xlu0 %v285, 64
    %v973 = vpop.permute.xlu0 %972
    %974 = vrot.lane.b32.xlu0 %v286, 64
    %v975 = vpop.permute.xlu0 %974
    %976 = vrot.lane.b32.xlu0 %v287, 64
    %v977 = vpop.permute.xlu0 %976
    %978 = vrot.lane.b32.xlu0 %v288, 64
    %v979 = vpop.permute.xlu0 %978
    %v980 = vsel %vm215, %v281, %v965
    %v981 = vsel %vm215, %v282, %v967
    %v982 = vsel %vm215, %v283, %v969
    %v983 = vsel %vm215, %v284, %v971
    %v984 = vsel %vm215, %v285, %v973
    %v985 = vsel %vm215, %v286, %v975
    %v986 = vsel %vm215, %v287, %v977
    %v987 = vsel %vm215, %v288, %v979
    %v988 = vsel %vm215, %v965, %v281
    %v989 = vsel %vm215, %v967, %v282
    %v990 = vsel %vm215, %v969, %v283
    %v991 = vsel %vm215, %v971, %v284
    %v992 = vsel %vm215, %v973, %v285
    %v993 = vsel %vm215, %v975, %v286
    %v994 = vsel %vm215, %v977, %v287
    %v995 = vsel %vm215, %v979, %v288
    %v996 = vmul.f32 %v980, %v836
    %v997 = vmul.f32 %v981, %v838
    %v998 = vmul.f32 %v982, %v841
    %v999 = vmul.f32 %v983, %v843
    %v1000 = vmul.f32 %v984, %v846
    %v1001 = vmul.f32 %v985, %v848
    %v1002 = vmul.f32 %v986, %v851
    %v1003 = vmul.f32 %v987, %v853
    %v1004 = vmul.f32 %v988, %v945
    %v1005 = vmul.f32 %v989, %v947
    %v1006 = vmul.f32 %v990, %v950
    %v1007 = vmul.f32 %v991, %v952
    %v1008 = vmul.f32 %v992, %v955
    %v1009 = vmul.f32 %v993, %v957
    %v1010 = vmul.f32 %v994, %v960
    %v1011 = vmul.f32 %v995, %v962
    %v1012 = vadd.f32 %v996, %v1004
    %v1013 = vadd.f32 %v997, %v1005
    %v1014 = vadd.f32 %v998, %v1006
    %v1015 = vadd.f32 %v999, %v1007
    %v1016 = vadd.f32 %v1000, %v1008
    %v1017 = vadd.f32 %v1001, %v1009
    %v1018 = vadd.f32 %v1002, %v1010
    %v1019 = vadd.f32 %v1003, %v1011
    %v1020 = vpack.c.bf16 %v1013, %v1012
    %v1021 = vpack.c.bf16 %v1015, %v1014
    %v1022 = vpack.c.bf16 %v1017, %v1016
    %v1023 = vpack.c.bf16 %v1019, %v1018
    %v1040 = vunpack.c.l.b16 %v85
    %v1041 = vunpack.c.l.b16 %v86
    %v1042 = vunpack.c.l.b16 %v87
    %v1043 = vunpack.c.l.b16 %v88
    %v1044 = vunpack.c.l.b16 %v89
    %v1045 = vunpack.c.l.b16 %v90
    %v1046 = vunpack.c.l.b16 %v91
    %v1047 = vunpack.c.l.b16 %v92
    %v1048 = vunpack.c.l.b16 %v93
    %v1049 = vunpack.c.l.b16 %v94
    %v1050 = vunpack.c.l.b16 %v95
    %v1051 = vunpack.c.l.b16 %v96
    %v1052 = vunpack.c.l.b16 %v97
    %v1053 = vunpack.c.l.b16 %v98
    %v1054 = vunpack.c.l.b16 %v99
    %v1055 = vunpack.c.l.b16 %v100
    %v1056 = vpack.c.b16 %v1041, %v1040
    %v1057 = vpack.c.b16 %v1043, %v1042
    %v1058 = vpack.c.b16 %v1045, %v1044
    %v1059 = vpack.c.b16 %v1047, %v1046
    %v1060 = vpack.c.b16 %v1049, %v1048
    %v1061 = vpack.c.b16 %v1051, %v1050
    %v1062 = vpack.c.b16 %v1053, %v1052
    %v1063 = vpack.c.b16 %v1055, %v1054
    %v1065 = vsel %vm333, %v1056, 0
    %v1068 = vsel %vm333, %v1057, 0
    %v1071 = vsel %vm333, %v1058, 0
    %v1074 = vsel %vm333, %v1059, 0
    %v1077 = vsel %vm333, %v1060, 0
    %v1080 = vsel %vm333, %v1061, 0
    %v1083 = vsel %vm333, %v1062, 0
    %v1086 = vsel %vm333, %v1063, 0
    %1088 = vmatpush.bf16.msra.mxu0 0
    %1089 = vmatpush.bf16.msra.mxu0 0
    %1090 = vmatpush.bf16.msra.mxu0 0
    %1091 = vmatpush.bf16.msra.mxu0 0
    %1092 = vmatpush.bf16.msra.mxu0 %v1023
    %1093 = vmatpush.bf16.msra.mxu0 %v1022
    %1094 = vmatpush.bf16.msra.mxu0 %v1021
    %1095 = vmatpush.bf16.msra.mxu0 %v1020
    %1096 = vmatmul.bf16.gmra.mxu0 %v1065
    %v1097 = vpop.f32.mrf.mxu0
    %v1098 = vadd.f32 0.0, %v1097
    %v1099 = vpop.f32.mrf.mxu0
    %v1100 = vadd.f32 0.0, %v1099
    %1101 = vmatmul.bf16.gmra.mxu0 %v1068
    %v1102 = vpop.f32.mrf.mxu0
    %v1103 = vadd.f32 0.0, %v1102
    %v1104 = vpop.f32.mrf.mxu0
    %v1105 = vadd.f32 0.0, %v1104
    %1106 = vmatmul.bf16.gmra.mxu0 %v1071
    %v1107 = vpop.f32.mrf.mxu0
    %v1108 = vadd.f32 0.0, %v1107
    %v1109 = vpop.f32.mrf.mxu0
    %v1110 = vadd.f32 0.0, %v1109
    %1111 = vmatmul.bf16.gmra.mxu0 %v1074
    %v1112 = vpop.f32.mrf.mxu0
    %v1113 = vadd.f32 0.0, %v1112
    %v1114 = vpop.f32.mrf.mxu0
    %v1115 = vadd.f32 0.0, %v1114
    %1116 = vmatmul.bf16.gmra.mxu0 %v1077
    %v1117 = vpop.f32.mrf.mxu0
    %v1118 = vadd.f32 0.0, %v1117
    %v1119 = vpop.f32.mrf.mxu0
    %v1120 = vadd.f32 0.0, %v1119
    %1121 = vmatmul.bf16.gmra.mxu0 %v1080
    %v1122 = vpop.f32.mrf.mxu0
    %v1123 = vadd.f32 0.0, %v1122
    %v1124 = vpop.f32.mrf.mxu0
    %v1125 = vadd.f32 0.0, %v1124
    %1126 = vmatmul.bf16.gmra.mxu0 %v1083
    %v1127 = vpop.f32.mrf.mxu0
    %v1128 = vadd.f32 0.0, %v1127
    %v1129 = vpop.f32.mrf.mxu0
    %v1130 = vadd.f32 0.0, %v1129
    %1131 = vmatmul.bf16.gmra.mxu0 %v1086
    %v1132 = vpop.f32.mrf.mxu0
    %v1133 = vadd.f32 0.0, %v1132
    %v1134 = vpop.f32.mrf.mxu0
    %v1135 = vadd.f32 0.0, %v1134
    %1136 = vdwg.mxu0
    %1137 = vrot.lane.b32.xlu0 %v1098, 64
    %v1138 = vpop.permute.xlu0 %1137
    %1139 = vrot.lane.b32.xlu0 %v1100, 64
    %v1140 = vpop.permute.xlu0 %1139
    %1141 = vrot.lane.b32.xlu0 %v1103, 64
    %v1142 = vpop.permute.xlu0 %1141
    %1143 = vrot.lane.b32.xlu0 %v1105, 64
    %v1144 = vpop.permute.xlu0 %1143
    %1145 = vrot.lane.b32.xlu0 %v1108, 64
    %v1146 = vpop.permute.xlu0 %1145
    %1147 = vrot.lane.b32.xlu0 %v1110, 64
    %v1148 = vpop.permute.xlu0 %1147
    %1149 = vrot.lane.b32.xlu0 %v1113, 64
    %v1150 = vpop.permute.xlu0 %1149
    %1151 = vrot.lane.b32.xlu0 %v1115, 64
    %v1152 = vpop.permute.xlu0 %1151
    %1153 = vrot.lane.b32.xlu0 %v1118, 64
    %v1154 = vpop.permute.xlu0 %1153
    %1155 = vrot.lane.b32.xlu0 %v1120, 64
    %v1156 = vpop.permute.xlu0 %1155
    %1157 = vrot.lane.b32.xlu0 %v1123, 64
    %v1158 = vpop.permute.xlu0 %1157
    %1159 = vrot.lane.b32.xlu0 %v1125, 64
    %v1160 = vpop.permute.xlu0 %1159
    %1161 = vrot.lane.b32.xlu0 %v1128, 64
    %v1162 = vpop.permute.xlu0 %1161
    %1163 = vrot.lane.b32.xlu0 %v1130, 64
    %v1164 = vpop.permute.xlu0 %1163
    %1165 = vrot.lane.b32.xlu0 %v1133, 64
    %v1166 = vpop.permute.xlu0 %1165
    %1167 = vrot.lane.b32.xlu0 %v1135, 64
    %v1168 = vpop.permute.xlu0 %1167
    %v1169 = vsel %vm265, %v1098, %v1154
    %v1170 = vsel %vm266, %v1100, %v1156
    %v1171 = vsel %vm267, %v1103, %v1158
    %v1172 = vsel %vm268, %v1105, %v1160
    %v1173 = vsel %vm269, %v1108, %v1162
    %v1174 = vsel %vm270, %v1110, %v1164
    %v1175 = vsel %vm271, %v1113, %v1166
    %v1176 = vsel %vm272, %v1115, %v1168
    %v1177 = vsel %vm273, %v1118, %v1138
    %v1178 = vsel %vm274, %v1120, %v1140
    %v1179 = vsel %vm275, %v1123, %v1142
    %v1180 = vsel %vm276, %v1125, %v1144
    %v1181 = vsel %vm277, %v1128, %v1146
    %v1182 = vsel %vm278, %v1130, %v1148
    %v1183 = vsel %vm279, %v1133, %v1150
    %v1184 = vsel %vm280, %v1135, %v1152
    %v1185 = vpack.c.bf16 %v1170, %v1169
    %v1186 = vpack.c.bf16 %v1172, %v1171
    %v1187 = vpack.c.bf16 %v1174, %v1173
    %v1188 = vpack.c.bf16 %v1176, %v1175
    %v1189 = vpack.c.bf16 %v1178, %v1177
    %v1190 = vpack.c.bf16 %v1180, %v1179
    %v1191 = vpack.c.bf16 %v1182, %v1181
    %v1192 = vpack.c.bf16 %v1184, %v1183
    %v1209 = vunpack.c.l.b16 %v117
    %v1210 = vunpack.c.l.b16 %v118
    %v1211 = vunpack.c.l.b16 %v119
    %v1212 = vunpack.c.l.b16 %v120
    %v1213 = vunpack.c.l.b16 %v121
    %v1214 = vunpack.c.l.b16 %v122
    %v1215 = vunpack.c.l.b16 %v123
    %v1216 = vunpack.c.l.b16 %v124
    %v1217 = vunpack.c.l.b16 %v125
    %v1218 = vunpack.c.l.b16 %v126
    %v1219 = vunpack.c.l.b16 %v127
    %v1220 = vunpack.c.l.b16 %v128
    %v1221 = vunpack.c.l.b16 %v129
    %v1222 = vunpack.c.l.b16 %v130
    %v1223 = vunpack.c.l.b16 %v131
    %v1224 = vunpack.c.l.b16 %v132
    %v1225 = vpack.c.b16 %v1210, %v1209
    %v1226 = vpack.c.b16 %v1212, %v1211
    %v1227 = vpack.c.b16 %v1214, %v1213
    %v1228 = vpack.c.b16 %v1216, %v1215
    %v1229 = vpack.c.b16 %v1218, %v1217
    %v1230 = vpack.c.b16 %v1220, %v1219
    %v1231 = vpack.c.b16 %v1222, %v1221
    %v1232 = vpack.c.b16 %v1224, %v1223
    %1241 = vmatpush.bf16.msra.mxu0 %v1232
    %1242 = vmatpush.bf16.msra.mxu0 %v1231
    %1243 = vmatpush.bf16.msra.mxu0 %v1230
    %1244 = vmatpush.bf16.msra.mxu0 %v1229
    %1245 = vmatpush.bf16.msra.mxu0 %v1228
    %1246 = vmatpush.bf16.msra.mxu0 %v1227
    %1247 = vmatpush.bf16.msra.mxu0 %v1226
    %1248 = vmatpush.bf16.msra.mxu0 %v1225
    %1249 = vmatmul.bf16.gmra.mxu0 %v1185
    %v1250 = vpop.f32.mrf.mxu0
    %v1251 = vadd.f32 0.0, %v1250
    %v1252 = vpop.f32.mrf.mxu0
    %v1253 = vadd.f32 0.0, %v1252
    %1254 = vmatmul.bf16.gmra.mxu0 %v1186
    %v1255 = vpop.f32.mrf.mxu0
    %v1256 = vadd.f32 0.0, %v1255
    %v1257 = vpop.f32.mrf.mxu0
    %v1258 = vadd.f32 0.0, %v1257
    %1259 = vmatmul.bf16.gmra.mxu0 %v1187
    %v1260 = vpop.f32.mrf.mxu0
    %v1261 = vadd.f32 0.0, %v1260
    %v1262 = vpop.f32.mrf.mxu0
    %v1263 = vadd.f32 0.0, %v1262
    %1264 = vmatmul.bf16.gmra.mxu0 %v1188
    %v1265 = vpop.f32.mrf.mxu0
    %v1266 = vadd.f32 0.0, %v1265
    %v1267 = vpop.f32.mrf.mxu0
    %v1268 = vadd.f32 0.0, %v1267
    %1269 = vmatmul.bf16.gmra.mxu0 %v1189
    %v1270 = vpop.f32.mrf.mxu0
    %v1271 = vadd.f32 0.0, %v1270
    %v1272 = vpop.f32.mrf.mxu0
    %v1273 = vadd.f32 0.0, %v1272
    %1274 = vmatmul.bf16.gmra.mxu0 %v1190
    %v1275 = vpop.f32.mrf.mxu0
    %v1276 = vadd.f32 0.0, %v1275
    %v1277 = vpop.f32.mrf.mxu0
    %v1278 = vadd.f32 0.0, %v1277
    %1279 = vmatmul.bf16.gmra.mxu0 %v1191
    %v1280 = vpop.f32.mrf.mxu0
    %v1281 = vadd.f32 0.0, %v1280
    %v1282 = vpop.f32.mrf.mxu0
    %v1283 = vadd.f32 0.0, %v1282
    %1284 = vmatmul.bf16.gmra.mxu0 %v1192
    %v1285 = vpop.f32.mrf.mxu0
    %v1286 = vadd.f32 0.0, %v1285
    %v1287 = vpop.f32.mrf.mxu0
    %v1288 = vadd.f32 0.0, %v1287
    %1289 = vdwg.mxu0
    %v1290 = vmul.f32 %v165, %v1251
    %v1291 = vmul.f32 %v166, %v1253
    %v1292 = vmul.f32 %v167, %v1256
    %v1293 = vmul.f32 %v168, %v1258
    %v1294 = vmul.f32 %v169, %v1261
    %v1295 = vmul.f32 %v170, %v1263
    %v1296 = vmul.f32 %v171, %v1266
    %v1297 = vmul.f32 %v172, %v1268
    %v1298 = vmul.f32 %v173, %v1271
    %v1299 = vmul.f32 %v174, %v1273
    %v1300 = vmul.f32 %v175, %v1276
    %v1301 = vmul.f32 %v176, %v1278
    %v1302 = vmul.f32 %v177, %v1281
    %v1303 = vmul.f32 %v178, %v1283
    %v1304 = vmul.f32 %v179, %v1286
    %v1305 = vmul.f32 %v180, %v1288
    %v1306 = vadd.f32 %v1290, %v1298
    %v1307 = vadd.f32 %v1291, %v1299
    %v1308 = vadd.f32 %v1292, %v1300
    %v1309 = vadd.f32 %v1293, %v1301
    %v1310 = vadd.f32 %v1294, %v1302
    %v1311 = vadd.f32 %v1295, %v1303
    %v1312 = vadd.f32 %v1296, %v1304
    %v1313 = vadd.f32 %v1297, %v1305
    %v1314 = vadd.f32 %v521, %v1251
    %v1315 = vadd.f32 %v523, %v1253
    %v1316 = vadd.f32 %v526, %v1256
    %v1317 = vadd.f32 %v528, %v1258
    %v1318 = vadd.f32 %v531, %v1261
    %v1319 = vadd.f32 %v533, %v1263
    %v1320 = vadd.f32 %v536, %v1266
    %v1321 = vadd.f32 %v538, %v1268
    %v1322 = vadd.f32 %v541, %v1271
    %v1323 = vadd.f32 %v543, %v1273
    %v1324 = vadd.f32 %v546, %v1276
    %v1325 = vadd.f32 %v548, %v1278
    %v1326 = vadd.f32 %v551, %v1281
    %v1327 = vadd.f32 %v553, %v1283
    %v1328 = vadd.f32 %v556, %v1286
    %v1329 = vadd.f32 %v558, %v1288
    %v1330 = vmul.f32 %v181, %v1306
    %v1331 = vmul.f32 %v182, %v1307
    %v1332 = vmul.f32 %v183, %v1308
    %v1333 = vmul.f32 %v184, %v1309
    %v1334 = vmul.f32 %v185, %v1310
    %v1335 = vmul.f32 %v186, %v1311
    %v1336 = vmul.f32 %v187, %v1312
    %v1337 = vmul.f32 %v188, %v1313
    %v1338 = vmul.f32 %v189, %v1306
    %v1339 = vmul.f32 %v190, %v1307
    %v1340 = vmul.f32 %v191, %v1308
    %v1341 = vmul.f32 %v192, %v1309
    %v1342 = vmul.f32 %v193, %v1310
    %v1343 = vmul.f32 %v194, %v1311
    %v1344 = vmul.f32 %v195, %v1312
    %v1345 = vmul.f32 %v196, %v1313
    %v1346 = vsub.f32 %v1314, %v1330
    %v1347 = vsub.f32 %v1315, %v1331
    %v1348 = vsub.f32 %v1316, %v1332
    %v1349 = vsub.f32 %v1317, %v1333
    %v1350 = vsub.f32 %v1318, %v1334
    %v1351 = vsub.f32 %v1319, %v1335
    %v1352 = vsub.f32 %v1320, %v1336
    %v1353 = vsub.f32 %v1321, %v1337
    %v1354 = vsub.f32 %v1322, %v1338
    %v1355 = vsub.f32 %v1323, %v1339
    %v1356 = vsub.f32 %v1324, %v1340
    %v1357 = vsub.f32 %v1325, %v1341
    %v1358 = vsub.f32 %v1326, %v1342
    %v1359 = vsub.f32 %v1327, %v1343
    %v1360 = vsub.f32 %v1328, %v1344
    %v1361 = vsub.f32 %v1329, %v1345
    %v1362 = vmul.f32 %v197, %v1346
    %v1363 = vmul.f32 %v198, %v1347
    %v1364 = vmul.f32 %v199, %v1348
    %v1365 = vmul.f32 %v200, %v1349
    %v1366 = vmul.f32 %v201, %v1350
    %v1367 = vmul.f32 %v202, %v1351
    %v1368 = vmul.f32 %v203, %v1352
    %v1369 = vmul.f32 %v204, %v1353
    %v1370 = vmul.f32 %v205, %v1354
    %v1371 = vmul.f32 %v206, %v1355
    %v1372 = vmul.f32 %v207, %v1356
    %v1373 = vmul.f32 %v208, %v1357
    %v1374 = vmul.f32 %v209, %v1358
    %v1375 = vmul.f32 %v210, %v1359
    %v1376 = vmul.f32 %v211, %v1360
    %v1377 = vmul.f32 %v212, %v1361
    %v1378 = vpack.c.bf16 %v1363, %v1362
    %v1379 = vpack.c.bf16 %v1365, %v1364
    %v1380 = vpack.c.bf16 %v1367, %v1366
    %v1381 = vpack.c.bf16 %v1369, %v1368
    %v1382 = vpack.c.bf16 %v1371, %v1370
    %v1383 = vpack.c.bf16 %v1373, %v1372
    %v1384 = vpack.c.bf16 %v1375, %v1374
    %v1385 = vpack.c.bf16 %v1377, %v1376
    %1386 = vmatpush.bf16.msra.mxu0 %v630
    %1387 = vmatpush.bf16.msra.mxu0 %v628
    %1388 = vmatpush.bf16.msra.mxu0 %v626
    %1389 = vmatpush.bf16.msra.mxu0 %v624
    %1390 = vmatpush.bf16.msra.mxu0 %v622
    %1391 = vmatpush.bf16.msra.mxu0 %v620
    %1392 = vmatpush.bf16.msra.mxu0 %v618
    %1393 = vmatpush.bf16.msra.mxu0 %v616
    %1394 = vmatmul.bf16.gmra.mxu0 %v1378
    %v1395 = vpop.f32.mrf.mxu0
    %v1396 = vadd.f32 0.0, %v1395
    %v1397 = vpop.f32.mrf.mxu0
    %v1398 = vadd.f32 0.0, %v1397
    %1399 = vmatmul.bf16.gmra.mxu0 %v1379
    %v1400 = vpop.f32.mrf.mxu0
    %v1401 = vadd.f32 0.0, %v1400
    %v1402 = vpop.f32.mrf.mxu0
    %v1403 = vadd.f32 0.0, %v1402
    %1404 = vmatmul.bf16.gmra.mxu0 %v1380
    %v1405 = vpop.f32.mrf.mxu0
    %v1406 = vadd.f32 0.0, %v1405
    %v1407 = vpop.f32.mrf.mxu0
    %v1408 = vadd.f32 0.0, %v1407
    %1409 = vmatmul.bf16.gmra.mxu0 %v1381
    %v1410 = vpop.f32.mrf.mxu0
    %v1411 = vadd.f32 0.0, %v1410
    %v1412 = vpop.f32.mrf.mxu0
    %v1413 = vadd.f32 0.0, %v1412
    %1414 = vmatmul.bf16.gmra.mxu0 %v1382
    %v1415 = vpop.f32.mrf.mxu0
    %v1416 = vadd.f32 0.0, %v1415
    %v1417 = vpop.f32.mrf.mxu0
    %v1418 = vadd.f32 0.0, %v1417
    %1419 = vmatmul.bf16.gmra.mxu0 %v1383
    %v1420 = vpop.f32.mrf.mxu0
    %v1421 = vadd.f32 0.0, %v1420
    %v1422 = vpop.f32.mrf.mxu0
    %v1423 = vadd.f32 0.0, %v1422
    %1424 = vmatmul.bf16.gmra.mxu0 %v1384
    %v1425 = vpop.f32.mrf.mxu0
    %v1426 = vadd.f32 0.0, %v1425
    %v1427 = vpop.f32.mrf.mxu0
    %v1428 = vadd.f32 0.0, %v1427
    %1429 = vmatmul.bf16.gmra.mxu0 %v1385
    %v1430 = vpop.f32.mrf.mxu0
    %v1431 = vadd.f32 0.0, %v1430
    %v1432 = vpop.f32.mrf.mxu0
    %v1433 = vadd.f32 0.0, %v1432
    %1434 = vdwg.mxu0
    %1435 = vrot.lane.b32.xlu0 %v1396, 64
    %v1436 = vpop.permute.xlu0 %1435
    %1437 = vrot.lane.b32.xlu0 %v1398, 64
    %v1438 = vpop.permute.xlu0 %1437
    %1439 = vrot.lane.b32.xlu0 %v1401, 64
    %v1440 = vpop.permute.xlu0 %1439
    %1441 = vrot.lane.b32.xlu0 %v1403, 64
    %v1442 = vpop.permute.xlu0 %1441
    %1443 = vrot.lane.b32.xlu0 %v1406, 64
    %v1444 = vpop.permute.xlu0 %1443
    %1445 = vrot.lane.b32.xlu0 %v1408, 64
    %v1446 = vpop.permute.xlu0 %1445
    %1447 = vrot.lane.b32.xlu0 %v1411, 64
    %v1448 = vpop.permute.xlu0 %1447
    %1449 = vrot.lane.b32.xlu0 %v1413, 64
    %v1450 = vpop.permute.xlu0 %1449
    %1451 = vrot.lane.b32.xlu0 %v1416, 64
    %v1452 = vpop.permute.xlu0 %1451
    %1453 = vrot.lane.b32.xlu0 %v1418, 64
    %v1454 = vpop.permute.xlu0 %1453
    %1455 = vrot.lane.b32.xlu0 %v1421, 64
    %v1456 = vpop.permute.xlu0 %1455
    %1457 = vrot.lane.b32.xlu0 %v1423, 64
    %v1458 = vpop.permute.xlu0 %1457
    %1459 = vrot.lane.b32.xlu0 %v1426, 64
    %v1460 = vpop.permute.xlu0 %1459
    %1461 = vrot.lane.b32.xlu0 %v1428, 64
    %v1462 = vpop.permute.xlu0 %1461
    %1463 = vrot.lane.b32.xlu0 %v1431, 64
    %v1464 = vpop.permute.xlu0 %1463
    %1465 = vrot.lane.b32.xlu0 %v1433, 64
    %v1466 = vpop.permute.xlu0 %1465
    %v1467 = vsel %vm265, %v1396, %v1452
    %v1468 = vsel %vm266, %v1398, %v1454
    %v1469 = vsel %vm267, %v1401, %v1456
    %v1470 = vsel %vm268, %v1403, %v1458
    %v1471 = vsel %vm269, %v1406, %v1460
    %v1472 = vsel %vm270, %v1408, %v1462
    %v1473 = vsel %vm271, %v1411, %v1464
    %v1474 = vsel %vm272, %v1413, %v1466
    %v1475 = vsel %vm273, %v1416, %v1436
    %v1476 = vsel %vm274, %v1418, %v1438
    %v1477 = vsel %vm275, %v1421, %v1440
    %v1478 = vsel %vm276, %v1423, %v1442
    %v1479 = vsel %vm277, %v1426, %v1444
    %v1480 = vsel %vm278, %v1428, %v1446
    %v1481 = vsel %vm279, %v1431, %v1448
    %v1482 = vsel %vm280, %v1433, %v1450
    %v1483 = vpack.c.bf16 %v1468, %v1467
    %v1484 = vpack.c.bf16 %v1470, %v1469
    %v1485 = vpack.c.bf16 %v1472, %v1471
    %v1486 = vpack.c.bf16 %v1474, %v1473
    %v1487 = vpack.c.bf16 %v1476, %v1475
    %v1488 = vpack.c.bf16 %v1478, %v1477
    %v1489 = vpack.c.bf16 %v1480, %v1479
    %v1490 = vpack.c.bf16 %v1482, %v1481
    %1491 = vmatpush.bf16.msra.mxu0 %v1490
    %1492 = vmatpush.bf16.msra.mxu0 %v1489
    %1493 = vmatpush.bf16.msra.mxu0 %v1488
    %1494 = vmatpush.bf16.msra.mxu0 %v1487
    %1495 = vmatpush.bf16.msra.mxu0 %v1486
    %1496 = vmatpush.bf16.msra.mxu0 %v1485
    %1497 = vmatpush.bf16.msra.mxu0 %v1484
    %1498 = vmatpush.bf16.msra.mxu0 %v1483
    %1499 = vmatmul.bf16.gmra.mxu0 %v927
    %v1500 = vpop.f32.mrf.mxu0
    %v1501 = vadd.f32 0.0, %v1500
    %v1502 = vpop.f32.mrf.mxu0
    %v1503 = vadd.f32 0.0, %v1502
    %1504 = vmatmul.bf16.gmra.mxu0 %v928
    %v1505 = vpop.f32.mrf.mxu0
    %v1506 = vadd.f32 0.0, %v1505
    %v1507 = vpop.f32.mrf.mxu0
    %v1508 = vadd.f32 0.0, %v1507
    %1509 = vmatmul.bf16.gmra.mxu0 %v929
    %v1510 = vpop.f32.mrf.mxu0
    %v1511 = vadd.f32 0.0, %v1510
    %v1512 = vpop.f32.mrf.mxu0
    %v1513 = vadd.f32 0.0, %v1512
    %1514 = vmatmul.bf16.gmra.mxu0 %v930
    %v1515 = vpop.f32.mrf.mxu0
    %v1516 = vadd.f32 0.0, %v1515
    %v1517 = vpop.f32.mrf.mxu0
    %v1518 = vadd.f32 0.0, %v1517
    %1519 = vdwg.mxu0
    %1520 = vst [vmem:[#allocation8] sm:$0xff] %v1501
    %1521 = vst [vmem:[#allocation8 + $0x8] sm:$0xff] %v1503
    %1522 = vst [vmem:[#allocation8 + $0x10] sm:$0xff] %v1506
    %1523 = vst [vmem:[#allocation8 + $0x18] sm:$0xff] %v1508
    %1524 = vst [vmem:[#allocation8 + $0x20] sm:$0xff] %v1511
    %1525 = vst [vmem:[#allocation8 + $0x28] sm:$0xff] %v1513
    %1526 = vst [vmem:[#allocation8 + $0x30] sm:$0xff] %v1516
    %1527 = vst [vmem:[#allocation8 + $0x38] sm:$0xff] %v1518
    // Predicated region
    $region34: #{tpu_custom_call.1} parent=1 // pred_check
      _
    $region35: #{tpu_custom_call.1} parent=1 // pred_check_branch
      %1529 = sbr.rel (0) target = $region37
    $region36: #{tpu_custom_call.1} parent=1 // pred_region
      %1531 = vsyncadd [#allocation4], 0
      %s1532 = sshll.u32 [#allocation8], 4
      %s1533 = int_to_ptr.vmem [resolvable:$true] %s1532
      %s1534 = sshll.u32 %s5, 4
      %s1535 = int_to_ptr.hbm [resolvable:$true] %s1534
      %1540 = dma.vmem_to_hbm [thread:$0]  %s1533, 1024, %s1535, [#allocation4], 128, 128, 8
    $region37: #{tpu_custom_call.1} parent=1 // pred_fallthru
      _
    // Predicated region
    $region38: #{tpu_custom_call.1} parent=1 // pred_check
      _
    $region39: #{tpu_custom_call.1} parent=1 // pred_check_branch
      %1542 = sbr.rel (0) target = $region41
    $region40: #{tpu_custom_call.1} parent=1 // pred_region
      %1544 = dma.done [#allocation4], 1024
    $region41: #{tpu_custom_call.1} parent=1 // pred_fallthru
      _
    %1545 = vsyncpa [#allocation3], 1
    %1546 = vsyncpa [#allocation6], 1
    %1547 = vsyncpa [#allocation4], 1

</llo_original>
